<compile_context>
chip_gen: v7x
topology: tpu7x:2x2x1
jax: 0.10.0
libtpu: 0.0.40
codegen_flags: <defaults>
</compile_context>

<pallas_src>
import functools

import numpy as np
import jax
import jax.numpy as jnp
from jax.experimental import pallas as pl
from jax.experimental.pallas import tpu as pltpu

EPS = 1e-5


# --------------------------- JAX glue (gather-free) ---------------------------

def _interp_matrix_1d(n_in, n_out):
    """Dense (n_out, n_in) matrix for 1-D bilinear resize with align_corners=True."""
    if n_in == 1:
        return jnp.ones((n_out, 1), jnp.float32)
    c = np.arange(n_out, dtype=np.float64) * (n_in - 1) / (n_out - 1)
    lo = np.clip(np.floor(c).astype(np.int64), 0, n_in - 2)
    w = (c - lo).astype(np.float32)
    m = np.zeros((n_out, n_in), np.float32)
    m[np.arange(n_out), lo] += 1.0 - w
    m[np.arange(n_out), lo + 1] += w
    return jnp.asarray(m)


def upsample2x_align_corners(x):
    """F.interpolate(scale_factor=2, mode='bilinear', align_corners=True), NCHW,
    expressed as two small interpolation matmuls (no gathers)."""
    B, C, H, W = x.shape
    uh = _interp_matrix_1d(H, 2 * H)                     # (2H, H)
    uw = _interp_matrix_1d(W, 2 * W)                     # (2W, W)
    return jnp.einsum("oh,bchw,pw->bcop", uh, x, uw)


def _border_masks(H, W, block_b):
    """(9, 1, block_b*H*W) masks implementing zero padding of the 3x3/pad=1 conv for
    block_b samples stacked on the flattened-spatial (lane) axis.  They also zero any
    cross-sample leakage from the full-lane-axis rolls."""
    hh, ww = np.meshgrid(np.arange(H), np.arange(W), indexing="ij")
    rows = []
    for off in range(9):
        dy, dx = off // 3 - 1, off % 3 - 1
        ok = (hh + dy >= 0) & (hh + dy < H) & (ww + dx >= 0) & (ww + dx < W)
        rows.append(np.tile(ok.reshape(-1).astype(np.float32), block_b))
    return np.stack(rows)[:, None, :]


# ------------------------------ Pallas kernel --------------------------------

def make_kernel(H, W, block_b, Cm, compute_dtype):
    HW = H * W
    L = block_b * HW

    def kernel(mask_ref, x_ref, w1_ref, b1_ref, wa_ref, w3_ref, b2_ref,
               wo_ref, bo_ref, out_ref, xstack_ref, z_ref):
        Cin = x_ref.shape[0]
        x = x_ref[...]                                              # (Cin, L)

        # ---- conv1_1 (1x1, BN1 scale pre-folded into rows) + shift + ReLU ----
        h1 = jnp.dot(w1_ref[...], x, preferred_element_type=jnp.float32)   # (Cm, L)
        h1 = jnp.maximum(h1 + b1_ref[...], 0.0)

        # ---- residual operand of the merged output matmul: z = [y ; x] ----
        z_ref[Cm:, :] = x

        # ---- 9-tap im2col for the 3x3 CondConv (stride 1, pad 1): lane rolls +
        #      precomputed border masks, written straight into VMEM scratch ----
        h1c = h1.astype(compute_dtype)
        for off in range(9):
            dy, dx = off // 3 - 1, off % 3 - 1
            s = dy * W + dx
            if s == 0:
                xstack_ref[off * Cm:(off + 1) * Cm, :] = h1c
            else:
                t = pltpu.roll(h1c, shift=(-s) % L, axis=1)
                xstack_ref[off * Cm:(off + 1) * Cm, :] = t * mask_ref[off]

        # ---- per-sample CondConv: attention -> expert mix (BN2 scale pre-folded)
        #      -> ONE matmul over the 9*Cm contraction ----
        wa = wa_ref[...]                                            # (K, Cm)
        w3 = w3_ref[...]                                            # (K, Cm, 9*Cm)
        for bi in range(block_b):
            lo = bi * HW
            avg = jnp.mean(h1[:, lo:lo + HW], axis=1, keepdims=True)        # (Cm, 1)
            att = jax.nn.sigmoid(
                jnp.dot(wa, avg, preferred_element_type=jnp.float32))       # (K, 1)
            w_mix = jnp.sum(att[:, :, None] * w3, axis=0)                   # (Cm, 9*Cm)
            y = jnp.dot(w_mix.astype(compute_dtype), xstack_ref[:, lo:lo + HW],
                        preferred_element_type=jnp.float32)                 # (Cm, HW)
            y = jnp.maximum(y + b2_ref[...], 0.0)                           # BN2 + ReLU
            z_ref[:Cm, lo:lo + HW] = y.astype(compute_dtype)

        # ---- merged output stage: [w2*s3 | wr*sr] @ [y ; x] + (b3 + br), ReLU ----
        out = jnp.dot(wo_ref[...], z_ref[...], preferred_element_type=jnp.float32)
        out_ref[...] = jnp.maximum(out + bo_ref[...], 0.0)

    return kernel


def decoder_forward_pallas(x1, x2, kp, *, block_b=2, compute_dtype=jnp.float32):
    B, Cin, H, W = x2.shape
    assert B % block_b == 0, "block_b must divide the batch"
    HW = H * W
    Lb = block_b * HW
    Cm = kp["w1"].shape[0]
    Cout = kp["wo"].shape[0]

    # decoder glue (fused under jit): matmul-based 2x upsample + skip add, then
    # channels-first with (batch*spatial) flattened onto the lane axis.
    x = upsample2x_align_corners(x1) + x2                           # (B, Cin, H, W)
    xk = jnp.transpose(x, (1, 0, 2, 3)).reshape(Cin, B * HW).astype(compute_dtype)

    masks = jnp.asarray(_border_masks(H, W, block_b), dtype=compute_dtype)

    args = (masks, xk,
            kp["w1"].astype(compute_dtype), kp["b1"],
            kp["wa"], kp["w3"], kp["b2"],
            kp["wo"].astype(compute_dtype), kp["bo"])

    def full_spec(a):
        return pl.BlockSpec(a.shape, lambda b, _nd=a.ndim: (0,) * _nd)

    in_specs = [full_spec(masks),
                pl.BlockSpec((Cin, Lb), lambda b: (0, b))]
    in_specs += [full_spec(a) for a in args[2:]]

    out = pl.pallas_call(
        make_kernel(H, W, block_b, Cm, compute_dtype),
        out_shape=jax.ShapeDtypeStruct((Cout, B * HW), jnp.float32),
        grid_spec=pltpu.PrefetchScalarGridSpec(
            num_scalar_prefetch=0,
            grid=(B // block_b,),
            in_specs=in_specs,
            out_specs=pl.BlockSpec((Cout, Lb), lambda b: (0, b)),
            scratch_shapes=[pltpu.VMEM((9 * Cm, Lb), compute_dtype),   # im2col stack
                            pltpu.VMEM((Cm + Cin, Lb), compute_dtype)],  # [y ; x]
        ),
        compiler_params=pltpu.CompilerParams(dimension_semantics=("parallel",)),
    )(*args)

    return jnp.transpose(out.reshape(Cout, B, H, W), (1, 0, 2, 3))    # NCHW


# -------------------------- parameters (synthetic) ----------------------------

def init_params(key, in_ch, out_ch, K=4):
    Cm = out_ch // 4
    ks = jax.random.split(key, 21)

    def norm(k, shape, scale):
        return scale * jax.random.normal(k, shape, jnp.float32)

    w1_t = norm(ks[0], (Cm, in_ch), 0.3)             # conv1_1 (1x1, no bias)
    wa_t = norm(ks[1], (K, Cm), 0.3)                 # attention 1x1 (no bias)
    w3_t = norm(ks[2], (K, Cm, Cm, 3, 3), 0.2)       # CondConv expert bank (bias=False)
    w2_t = norm(ks[3], (out_ch, Cm), 0.3)            # conv1_2 (1x1, no bias)
    wr_t = norm(ks[4], (out_ch, in_ch), 0.3)         # conv_res (1x1, no bias)

    def bn(kg, kb, km, kv, C):
        g = 1.0 + 0.1 * jax.random.normal(kg, (C,), jnp.float32)
        bt = 0.1 * jax.random.normal(kb, (C,), jnp.float32)
        m = 0.1 * jax.random.normal(km, (C,), jnp.float32)
        v = jax.random.uniform(kv, (C,), jnp.float32, minval=0.5, maxval=1.5)
        return g, bt, m, v

    return {
        "w1_t": w1_t, "wa_t": wa_t, "w3_t": w3_t, "w2_t": w2_t, "wr_t": wr_t,
        "bn1": bn(ks[5], ks[6], ks[7], ks[8], Cm),
        "bn2": bn(ks[9], ks[10], ks[11], ks[12], Cm),
        "bn3": bn(ks[13], ks[14], ks[15], ks[16], out_ch),
        "bnr": bn(ks[17], ks[18], ks[19], ks[20], out_ch),
    }


def prepare_kernel_params(P):
    """Host-side, once: fold BN scales into weights and pre-merge the output stage."""
    K, Cm = P["w3_t"].shape[:2]

    def scale_shift(bnp):
        g, bt, m, v = bnp
        s = g / jnp.sqrt(v + EPS)
        return s, bt - m * s

    s1, b1 = scale_shift(P["bn1"])
    s2, b2 = scale_shift(P["bn2"])
    s3, b3 = scale_shift(P["bn3"])
    sr, br = scale_shift(P["bnr"])

    # CondConv experts: (K,O,I,3,3) -> (K,O,kh,kw,I) -> (K,O,9*I) tap-major columns,
    # with BN2's scale folded into each expert's output rows (so w_mix is pre-scaled).
    w3 = jnp.transpose(P["w3_t"], (0, 1, 3, 4, 2)).reshape(K, Cm, 9 * Cm)
    w3 = w3 * s2[None, :, None]

    return {
        "w1": P["w1_t"] * s1[:, None],                               # (Cm, Cin)
        "b1": b1.reshape(-1, 1),
        "wa": P["wa_t"],                                             # (K, Cm)
        "w3": w3,                                                    # (K, Cm, 9*Cm)
        "b2": b2.reshape(-1, 1),
        "wo": jnp.concatenate([P["w2_t"] * s3[:, None],              # (Cout, Cm+Cin)
                               P["wr_t"] * sr[:, None]], axis=1),
        "bo": (b3 + br).reshape(-1, 1),
    }


# ----------------------- pure-JAX reference (for check) -----------------------

def ref_forward(x1, x2, P):
    x = upsample2x_align_corners(x1) + x2

    def bn_nchw(y, bnp):
        g, bt, m, v = bnp
        s = g / jnp.sqrt(v + EPS)
        return y * s[None, :, None, None] + (bt - m * s)[None, :, None, None]

    h1 = jax.nn.relu(bn_nchw(jnp.einsum("bchw,dc->bdhw", x, P["w1_t"]), P["bn1"]))
    avg = h1.mean(axis=(2, 3))
    att = jax.nn.sigmoid(jnp.einsum("bc,kc->bk", avg, P["wa_t"]))
    wagg = jnp.einsum("bk,koihw->boihw", att, P["w3_t"])            # (B, Cm, Cm, 3, 3)
    B = x.shape[0]
    ys = [jax.lax.conv_general_dilated(
            h1[b:b + 1], wagg[b], window_strides=(1, 1),
            padding=((1, 1), (1, 1)),
            dimension_numbers=("NCHW", "OIHW", "NCHW")) for b in range(B)]
    y = jax.nn.relu(bn_nchw(jnp.concatenate(ys, axis=0), P["bn2"]))
    h3 = bn_nchw(jnp.einsum("bchw,dc->bdhw", y, P["w2_t"]), P["bn3"])
    res = bn_nchw(jnp.einsum("bchw,dc->bdhw", x, P["wr_t"]), P["bnr"])
    return jax.nn.relu(res + h3)


# ----------------------------------- main -------------------------------------

if __name__ == "__main__":
    key = jax.random.PRNGKey(0)
    k1, k2, kparam = jax.random.split(key, 3)

    B, in_ch, out_ch = 4, 16, 32
    H, W = 16, 16
    x1 = jax.random.normal(k1, (B, in_ch, H // 2, W // 2), jnp.float32)
    x2 = jax.random.normal(k2, (B, in_ch, H, W), jnp.float32)

    P = init_params(kparam, in_ch, out_ch, K=4)
    KP = prepare_kernel_params(P)

    # block_b=2 -> grid=(2,) with a parallel batch axis (keeps both v7x TCs busy).
    fwd = jax.jit(functools.partial(decoder_forward_pallas, block_b=2))
    out = jax.block_until_ready(fwd(x1, x2, KP))

    ref = ref_forward(x1, x2, P)
    np.testing.assert_allclose(np.asarray(out), np.asarray(ref), rtol=2e-3, atol=2e-3)

    print("KERNEL_OK")
</pallas_src>

<mosaic_0001>
module attributes {stable_mosaic.version = 11 : i64} {
  func.func @kernel(%arg0: i32, %arg1: memref<9x1x512xf32, #tpu.memory_space<vmem>>, %arg2: memref<16x512xf32, #tpu.memory_space<vmem>>, %arg3: memref<8x16xf32, #tpu.memory_space<vmem>>, %arg4: memref<8x1xf32, #tpu.memory_space<vmem>>, %arg5: memref<4x8xf32, #tpu.memory_space<vmem>>, %arg6: memref<4x8x72xf32, #tpu.memory_space<vmem>>, %arg7: memref<8x1xf32, #tpu.memory_space<vmem>>, %arg8: memref<32x24xf32, #tpu.memory_space<vmem>>, %arg9: memref<32x1xf32, #tpu.memory_space<vmem>>, %arg10: memref<32x512xf32, #tpu.memory_space<vmem>>, %arg11: memref<72x512xf32, #tpu.memory_space<vmem>>, %arg12: memref<24x512xf32, #tpu.memory_space<vmem>>) attributes {dimension_semantics = [#tpu.dimension_semantics<parallel>], iteration_bounds = array<i64: 2>, scalar_prefetch = 0 : i64, scratch_operands = 2 : i64, tpu.core_type = #tpu.core_type<tc>, window_params = [{pipeline_mode = #tpu.pipeline_mode<synchronous>, transform_indices = @transform_0, window_bounds = array<i64: 9, 1, 512>}, {transform_indices = @transform_1, window_bounds = array<i64: 16, 512>}, {pipeline_mode = #tpu.pipeline_mode<synchronous>, transform_indices = @transform_2, window_bounds = array<i64: 8, 16>}, {pipeline_mode = #tpu.pipeline_mode<synchronous>, transform_indices = @transform_3, window_bounds = array<i64: 8, 1>}, {pipeline_mode = #tpu.pipeline_mode<synchronous>, transform_indices = @transform_4, window_bounds = array<i64: 4, 8>}, {pipeline_mode = #tpu.pipeline_mode<synchronous>, transform_indices = @transform_5, window_bounds = array<i64: 4, 8, 72>}, {pipeline_mode = #tpu.pipeline_mode<synchronous>, transform_indices = @transform_6, window_bounds = array<i64: 8, 1>}, {pipeline_mode = #tpu.pipeline_mode<synchronous>, transform_indices = @transform_7, window_bounds = array<i64: 32, 24>}, {pipeline_mode = #tpu.pipeline_mode<synchronous>, transform_indices = @transform_8, window_bounds = array<i64: 32, 1>}, {transform_indices = @transform_9, window_bounds = array<i64: 32, 512>}]} {
    %c0 = arith.constant 0 : index
    %c0_0 = arith.constant 0 : index
    %0 = vector.load %arg2[%c0, %c0_0] : memref<16x512xf32, #tpu.memory_space<vmem>>, vector<16x512xf32>
    %c0_1 = arith.constant 0 : index
    %c0_2 = arith.constant 0 : index
    %1 = vector.load %arg3[%c0_1, %c0_2] : memref<8x16xf32, #tpu.memory_space<vmem>>, vector<8x16xf32>
    %cst = arith.constant dense<0.000000e+00> : vector<8x512xf32>
    %2 = tpu.matmul %1, %0, %cst {dimension_numbers = #tpu.dot_dimension_numbers<[1], [0], [0], [1], [0, 0, 1, 1], [], []>} : vector<8x16xf32>, vector<16x512xf32>, vector<8x512xf32> -> vector<8x512xf32>
    %c0_3 = arith.constant 0 : index
    %c0_4 = arith.constant 0 : index
    %3 = vector.load %arg4[%c0_3, %c0_4] : memref<8x1xf32, #tpu.memory_space<vmem>>, vector<8x1xf32>
    %4 = vector.broadcast %3 : vector<8x1xf32> to vector<8x512xf32>
    %5 = arith.addf %2, %4 : vector<8x512xf32>
    %cst_5 = arith.constant 0.000000e+00 : f32
    %6 = vector.broadcast %cst_5 : f32 to vector<8x512xf32>
    %7 = arith.maximumf %5, %6 : vector<8x512xf32>
    %c8 = arith.constant 8 : index
    %c0_6 = arith.constant 0 : index
    %8 = vector.load %arg12[%c8, %c0_6] : memref<24x512xf32, #tpu.memory_space<vmem>>, vector<16x512xf32>
    tpu.vector_store %arg12[%c8, %c0_6], %0 {strides = array<i32>} : memref<24x512xf32, #tpu.memory_space<vmem>>, vector<16x512xf32>,
    %c17_i32 = arith.constant 17 : i32
    %9 = tpu.dynamic_rotate %7 by %c17_i32 dim 1 : vector<8x512xf32>, i32 -> vector<8x512xf32>
    %c0_7 = arith.constant 0 : index
    %c0_8 = arith.constant 0 : index
    %c0_9 = arith.constant 0 : index
    %10 = vector.load %arg1[%c0_7, %c0_8, %c0_9] : memref<9x1x512xf32, #tpu.memory_space<vmem>>, vector<1x1x512xf32>
    %11 = vector.shape_cast %10 : vector<1x1x512xf32> to vector<1x512xf32>
    %12 = vector.broadcast %11 : vector<1x512xf32> to vector<8x512xf32>
    %13 = arith.mulf %9, %12 : vector<8x512xf32>
    %c0_10 = arith.constant 0 : index
    %c0_11 = arith.constant 0 : index
    %14 = vector.load %arg11[%c0_10, %c0_11] : memref<72x512xf32, #tpu.memory_space<vmem>>, vector<8x512xf32>
    tpu.vector_store %arg11[%c0_10, %c0_11], %13 {strides = array<i32>} : memref<72x512xf32, #tpu.memory_space<vmem>>, vector<8x512xf32>,
    %c16_i32 = arith.constant 16 : i32
    %15 = tpu.dynamic_rotate %7 by %c16_i32 dim 1 : vector<8x512xf32>, i32 -> vector<8x512xf32>
    %c1 = arith.constant 1 : index
    %c0_12 = arith.constant 0 : index
    %c0_13 = arith.constant 0 : index
    %16 = vector.load %arg1[%c1, %c0_12, %c0_13] : memref<9x1x512xf32, #tpu.memory_space<vmem>>, vector<1x1x512xf32>
    %17 = vector.shape_cast %16 : vector<1x1x512xf32> to vector<1x512xf32>
    %18 = vector.broadcast %17 : vector<1x512xf32> to vector<8x512xf32>
    %19 = arith.mulf %15, %18 : vector<8x512xf32>
    %c8_14 = arith.constant 8 : index
    %c0_15 = arith.constant 0 : index
    %20 = vector.load %arg11[%c8_14, %c0_15] : memref<72x512xf32, #tpu.memory_space<vmem>>, vector<8x512xf32>
    tpu.vector_store %arg11[%c8_14, %c0_15], %19 {strides = array<i32>} : memref<72x512xf32, #tpu.memory_space<vmem>>, vector<8x512xf32>,
    %c15_i32 = arith.constant 15 : i32
    %21 = tpu.dynamic_rotate %7 by %c15_i32 dim 1 : vector<8x512xf32>, i32 -> vector<8x512xf32>
    %c2 = arith.constant 2 : index
    %c0_16 = arith.constant 0 : index
    %c0_17 = arith.constant 0 : index
    %22 = vector.load %arg1[%c2, %c0_16, %c0_17] : memref<9x1x512xf32, #tpu.memory_space<vmem>>, vector<1x1x512xf32>
    %23 = vector.shape_cast %22 : vector<1x1x512xf32> to vector<1x512xf32>
    %24 = vector.broadcast %23 : vector<1x512xf32> to vector<8x512xf32>
    %25 = arith.mulf %21, %24 : vector<8x512xf32>
    %c16 = arith.constant 16 : index
    %c0_18 = arith.constant 0 : index
    %26 = vector.load %arg11[%c16, %c0_18] : memref<72x512xf32, #tpu.memory_space<vmem>>, vector<8x512xf32>
    tpu.vector_store %arg11[%c16, %c0_18], %25 {strides = array<i32>} : memref<72x512xf32, #tpu.memory_space<vmem>>, vector<8x512xf32>,
    %c1_i32 = arith.constant 1 : i32
    %27 = tpu.dynamic_rotate %7 by %c1_i32 dim 1 : vector<8x512xf32>, i32 -> vector<8x512xf32>
    %c3 = arith.constant 3 : index
    %c0_19 = arith.constant 0 : index
    %c0_20 = arith.constant 0 : index
    %28 = vector.load %arg1[%c3, %c0_19, %c0_20] : memref<9x1x512xf32, #tpu.memory_space<vmem>>, vector<1x1x512xf32>
    %29 = vector.shape_cast %28 : vector<1x1x512xf32> to vector<1x512xf32>
    %30 = vector.broadcast %29 : vector<1x512xf32> to vector<8x512xf32>
    %31 = arith.mulf %27, %30 : vector<8x512xf32>
    %c24 = arith.constant 24 : index
    %c0_21 = arith.constant 0 : index
    %32 = vector.load %arg11[%c24, %c0_21] : memref<72x512xf32, #tpu.memory_space<vmem>>, vector<8x512xf32>
    tpu.vector_store %arg11[%c24, %c0_21], %31 {strides = array<i32>} : memref<72x512xf32, #tpu.memory_space<vmem>>, vector<8x512xf32>,
    %c32 = arith.constant 32 : index
    %c0_22 = arith.constant 0 : index
    %33 = vector.load %arg11[%c32, %c0_22] : memref<72x512xf32, #tpu.memory_space<vmem>>, vector<8x512xf32>
    tpu.vector_store %arg11[%c32, %c0_22], %7 {strides = array<i32>} : memref<72x512xf32, #tpu.memory_space<vmem>>, vector<8x512xf32>,
    %c511_i32 = arith.constant 511 : i32
    %34 = tpu.dynamic_rotate %7 by %c511_i32 dim 1 : vector<8x512xf32>, i32 -> vector<8x512xf32>
    %c5 = arith.constant 5 : index
    %c0_23 = arith.constant 0 : index
    %c0_24 = arith.constant 0 : index
    %35 = vector.load %arg1[%c5, %c0_23, %c0_24] : memref<9x1x512xf32, #tpu.memory_space<vmem>>, vector<1x1x512xf32>
    %36 = vector.shape_cast %35 : vector<1x1x512xf32> to vector<1x512xf32>
    %37 = vector.broadcast %36 : vector<1x512xf32> to vector<8x512xf32>
    %38 = arith.mulf %34, %37 : vector<8x512xf32>
    %c40 = arith.constant 40 : index
    %c0_25 = arith.constant 0 : index
    %39 = vector.load %arg11[%c40, %c0_25] : memref<72x512xf32, #tpu.memory_space<vmem>>, vector<8x512xf32>
    tpu.vector_store %arg11[%c40, %c0_25], %38 {strides = array<i32>} : memref<72x512xf32, #tpu.memory_space<vmem>>, vector<8x512xf32>,
    %c497_i32 = arith.constant 497 : i32
    %40 = tpu.dynamic_rotate %7 by %c497_i32 dim 1 : vector<8x512xf32>, i32 -> vector<8x512xf32>
    %c6 = arith.constant 6 : index
    %c0_26 = arith.constant 0 : index
    %c0_27 = arith.constant 0 : index
    %41 = vector.load %arg1[%c6, %c0_26, %c0_27] : memref<9x1x512xf32, #tpu.memory_space<vmem>>, vector<1x1x512xf32>
    %42 = vector.shape_cast %41 : vector<1x1x512xf32> to vector<1x512xf32>
    %43 = vector.broadcast %42 : vector<1x512xf32> to vector<8x512xf32>
    %44 = arith.mulf %40, %43 : vector<8x512xf32>
    %c48 = arith.constant 48 : index
    %c0_28 = arith.constant 0 : index
    %45 = vector.load %arg11[%c48, %c0_28] : memref<72x512xf32, #tpu.memory_space<vmem>>, vector<8x512xf32>
    tpu.vector_store %arg11[%c48, %c0_28], %44 {strides = array<i32>} : memref<72x512xf32, #tpu.memory_space<vmem>>, vector<8x512xf32>,
    %c496_i32 = arith.constant 496 : i32
    %46 = tpu.dynamic_rotate %7 by %c496_i32 dim 1 : vector<8x512xf32>, i32 -> vector<8x512xf32>
    %c7 = arith.constant 7 : index
    %c0_29 = arith.constant 0 : index
    %c0_30 = arith.constant 0 : index
    %47 = vector.load %arg1[%c7, %c0_29, %c0_30] : memref<9x1x512xf32, #tpu.memory_space<vmem>>, vector<1x1x512xf32>
    %48 = vector.shape_cast %47 : vector<1x1x512xf32> to vector<1x512xf32>
    %49 = vector.broadcast %48 : vector<1x512xf32> to vector<8x512xf32>
    %50 = arith.mulf %46, %49 : vector<8x512xf32>
    %c56 = arith.constant 56 : index
    %c0_31 = arith.constant 0 : index
    %51 = vector.load %arg11[%c56, %c0_31] : memref<72x512xf32, #tpu.memory_space<vmem>>, vector<8x512xf32>
    tpu.vector_store %arg11[%c56, %c0_31], %50 {strides = array<i32>} : memref<72x512xf32, #tpu.memory_space<vmem>>, vector<8x512xf32>,
    %c495_i32 = arith.constant 495 : i32
    %52 = tpu.dynamic_rotate %7 by %c495_i32 dim 1 : vector<8x512xf32>, i32 -> vector<8x512xf32>
    %c8_32 = arith.constant 8 : index
    %c0_33 = arith.constant 0 : index
    %c0_34 = arith.constant 0 : index
    %53 = vector.load %arg1[%c8_32, %c0_33, %c0_34] : memref<9x1x512xf32, #tpu.memory_space<vmem>>, vector<1x1x512xf32>
    %54 = vector.shape_cast %53 : vector<1x1x512xf32> to vector<1x512xf32>
    %55 = vector.broadcast %54 : vector<1x512xf32> to vector<8x512xf32>
    %56 = arith.mulf %52, %55 : vector<8x512xf32>
    %c64 = arith.constant 64 : index
    %c0_35 = arith.constant 0 : index
    %57 = vector.load %arg11[%c64, %c0_35] : memref<72x512xf32, #tpu.memory_space<vmem>>, vector<8x512xf32>
    tpu.vector_store %arg11[%c64, %c0_35], %56 {strides = array<i32>} : memref<72x512xf32, #tpu.memory_space<vmem>>, vector<8x512xf32>,
    %c0_36 = arith.constant 0 : index
    %c0_37 = arith.constant 0 : index
    %58 = vector.load %arg5[%c0_36, %c0_37] : memref<4x8xf32, #tpu.memory_space<vmem>>, vector<4x8xf32>
    %c0_38 = arith.constant 0 : index
    %c0_39 = arith.constant 0 : index
    %c0_40 = arith.constant 0 : index
    %59 = vector.load %arg6[%c0_38, %c0_39, %c0_40] : memref<4x8x72xf32, #tpu.memory_space<vmem>>, vector<4x8x72xf32>
    %60 = vector.extract_strided_slice %7 {offsets = [0, 0], sizes = [8, 256], strides = [1, 1]} : vector<8x512xf32> to vector<8x256xf32>
    %cst_41 = arith.constant dense<0.000000e+00> : vector<8xf32>
    %61 = vector.multi_reduction <add>, %60, %cst_41 [1] : vector<8x256xf32> to vector<8xf32>
    %62 = vector.shape_cast %61 : vector<8xf32> to vector<8x1xf32>
    %cst_42 = arith.constant 2.560000e+02 : f32
    %63 = vector.broadcast %cst_42 : f32 to vector<8x1xf32>
    %64 = arith.divf %62, %63 : vector<8x1xf32>
    %cst_43 = arith.constant dense<0.000000e+00> : vector<4x1xf32>
    %65 = tpu.matmul %58, %64, %cst_43 {dimension_numbers = #tpu.dot_dimension_numbers<[1], [0], [0], [1], [0, 0, 1, 1], [], []>} : vector<4x8xf32>, vector<8x1xf32>, vector<4x1xf32> -> vector<4x1xf32>
    %66 = arith.negf %65 : vector<4x1xf32>
    %67 = math.exp %66 : vector<4x1xf32>
    %cst_44 = arith.constant 1.000000e+00 : f32
    %68 = vector.broadcast %cst_44 : f32 to vector<4x1xf32>
    %69 = arith.addf %68, %67 : vector<4x1xf32>
    %70 = arith.divf %68, %69 : vector<4x1xf32>
    %71 = vector.shape_cast %70 : vector<4x1xf32> to vector<4x1x1xf32>
    %72 = vector.broadcast %71 : vector<4x1x1xf32> to vector<4x8x72xf32>
    %73 = arith.mulf %72, %59 : vector<4x8x72xf32>
    %cst_45 = arith.constant dense<0.000000e+00> : vector<8x72xf32>
    %74 = vector.multi_reduction <add>, %73, %cst_45 [0] : vector<4x8x72xf32> to vector<8x72xf32>
    %c0_46 = arith.constant 0 : index
    %c0_47 = arith.constant 0 : index
    %75 = vector.load %arg11[%c0_46, %c0_47] : memref<72x512xf32, #tpu.memory_space<vmem>>, vector<72x256xf32>
    %cst_48 = arith.constant dense<0.000000e+00> : vector<8x256xf32>
    %76 = tpu.matmul %74, %75, %cst_48 {dimension_numbers = #tpu.dot_dimension_numbers<[1], [0], [0], [1], [0, 0, 1, 1], [], []>} : vector<8x72xf32>, vector<72x256xf32>, vector<8x256xf32> -> vector<8x256xf32>
    %c0_49 = arith.constant 0 : index
    %c0_50 = arith.constant 0 : index
    %77 = vector.load %arg7[%c0_49, %c0_50] : memref<8x1xf32, #tpu.memory_space<vmem>>, vector<8x1xf32>
    %78 = vector.broadcast %77 : vector<8x1xf32> to vector<8x256xf32>
    %79 = arith.addf %76, %78 : vector<8x256xf32>
    %cst_51 = arith.constant 0.000000e+00 : f32
    %80 = vector.broadcast %cst_51 : f32 to vector<8x256xf32>
    %81 = arith.maximumf %79, %80 : vector<8x256xf32>
    %c0_52 = arith.constant 0 : index
    %c0_53 = arith.constant 0 : index
    %82 = vector.load %arg12[%c0_52, %c0_53] : memref<24x512xf32, #tpu.memory_space<vmem>>, vector<8x256xf32>
    tpu.vector_store %arg12[%c0_52, %c0_53], %81 {strides = array<i32>} : memref<24x512xf32, #tpu.memory_space<vmem>>, vector<8x256xf32>,
    %83 = vector.extract_strided_slice %7 {offsets = [0, 256], sizes = [8, 256], strides = [1, 1]} : vector<8x512xf32> to vector<8x256xf32>
    %cst_54 = arith.constant dense<0.000000e+00> : vector<8xf32>
    %84 = vector.multi_reduction <add>, %83, %cst_54 [1] : vector<8x256xf32> to vector<8xf32>
    %85 = vector.shape_cast %84 : vector<8xf32> to vector<8x1xf32>
    %cst_55 = arith.constant 2.560000e+02 : f32
    %86 = vector.broadcast %cst_55 : f32 to vector<8x1xf32>
    %87 = arith.divf %85, %86 : vector<8x1xf32>
    %cst_56 = arith.constant dense<0.000000e+00> : vector<4x1xf32>
    %88 = tpu.matmul %58, %87, %cst_56 {dimension_numbers = #tpu.dot_dimension_numbers<[1], [0], [0], [1], [0, 0, 1, 1], [], []>} : vector<4x8xf32>, vector<8x1xf32>, vector<4x1xf32> -> vector<4x1xf32>
    %89 = arith.negf %88 : vector<4x1xf32>
    %90 = math.exp %89 : vector<4x1xf32>
    %cst_57 = arith.constant 1.000000e+00 : f32
    %91 = vector.broadcast %cst_57 : f32 to vector<4x1xf32>
    %92 = arith.addf %91, %90 : vector<4x1xf32>
    %93 = arith.divf %91, %92 : vector<4x1xf32>
    %94 = vector.shape_cast %93 : vector<4x1xf32> to vector<4x1x1xf32>
    %95 = vector.broadcast %94 : vector<4x1x1xf32> to vector<4x8x72xf32>
    %96 = arith.mulf %95, %59 : vector<4x8x72xf32>
    %cst_58 = arith.constant dense<0.000000e+00> : vector<8x72xf32>
    %97 = vector.multi_reduction <add>, %96, %cst_58 [0] : vector<4x8x72xf32> to vector<8x72xf32>
    %c0_59 = arith.constant 0 : index
    %c256 = arith.constant 256 : index
    %98 = vector.load %arg11[%c0_59, %c256] : memref<72x512xf32, #tpu.memory_space<vmem>>, vector<72x256xf32>
    %cst_60 = arith.constant dense<0.000000e+00> : vector<8x256xf32>
    %99 = tpu.matmul %97, %98, %cst_60 {dimension_numbers = #tpu.dot_dimension_numbers<[1], [0], [0], [1], [0, 0, 1, 1], [], []>} : vector<8x72xf32>, vector<72x256xf32>, vector<8x256xf32> -> vector<8x256xf32>
    %c0_61 = arith.constant 0 : index
    %c0_62 = arith.constant 0 : index
    %100 = vector.load %arg7[%c0_61, %c0_62] : memref<8x1xf32, #tpu.memory_space<vmem>>, vector<8x1xf32>
    %101 = vector.broadcast %100 : vector<8x1xf32> to vector<8x256xf32>
    %102 = arith.addf %99, %101 : vector<8x256xf32>
    %cst_63 = arith.constant 0.000000e+00 : f32
    %103 = vector.broadcast %cst_63 : f32 to vector<8x256xf32>
    %104 = arith.maximumf %102, %103 : vector<8x256xf32>
    %c0_64 = arith.constant 0 : index
    %c256_65 = arith.constant 256 : index
    %105 = vector.load %arg12[%c0_64, %c256_65] : memref<24x512xf32, #tpu.memory_space<vmem>>, vector<8x256xf32>
    tpu.vector_store %arg12[%c0_64, %c256_65], %104 {strides = array<i32>} : memref<24x512xf32, #tpu.memory_space<vmem>>, vector<8x256xf32>,
    %c0_66 = arith.constant 0 : index
    %c0_67 = arith.constant 0 : index
    %106 = vector.load %arg8[%c0_66, %c0_67] : memref<32x24xf32, #tpu.memory_space<vmem>>, vector<32x24xf32>
    %c0_68 = arith.constant 0 : index
    %c0_69 = arith.constant 0 : index
    %107 = vector.load %arg12[%c0_68, %c0_69] : memref<24x512xf32, #tpu.memory_space<vmem>>, vector<24x512xf32>
    %cst_70 = arith.constant dense<0.000000e+00> : vector<32x512xf32>
    %108 = tpu.matmul %106, %107, %cst_70 {dimension_numbers = #tpu.dot_dimension_numbers<[1], [0], [0], [1], [0, 0, 1, 1], [], []>} : vector<32x24xf32>, vector<24x512xf32>, vector<32x512xf32> -> vector<32x512xf32>
    %c0_71 = arith.constant 0 : index
    %c0_72 = arith.constant 0 : index
    %109 = vector.load %arg9[%c0_71, %c0_72] : memref<32x1xf32, #tpu.memory_space<vmem>>, vector<32x1xf32>
    %110 = vector.broadcast %109 : vector<32x1xf32> to vector<32x512xf32>
    %111 = arith.addf %108, %110 : vector<32x512xf32>
    %cst_73 = arith.constant 0.000000e+00 : f32
    %112 = vector.broadcast %cst_73 : f32 to vector<32x512xf32>
    %113 = arith.maximumf %111, %112 : vector<32x512xf32>
    %c0_74 = arith.constant 0 : index
    %c0_75 = arith.constant 0 : index
    %114 = vector.load %arg10[%c0_74, %c0_75] : memref<32x512xf32, #tpu.memory_space<vmem>>, vector<32x512xf32>
    tpu.vector_store %arg10[%c0_74, %c0_75], %113 {strides = array<i32>} : memref<32x512xf32, #tpu.memory_space<vmem>>, vector<32x512xf32>,
    return
  }
  func.func @transform_0(%arg0: i32) -> (i32, i32, i32) {
    %c0_i32 = arith.constant 0 : i32
    %c0_i32_0 = arith.constant 0 : i32
    %c0_i32_1 = arith.constant 0 : i32
    %c0_i32_2 = arith.constant 0 : i32
    return %c0_i32, %c0_i32_0, %c0_i32_1 : i32, i32, i32
  }
  func.func @transform_1(%arg0: i32) -> (i32, i32) {
    %c0_i32 = arith.constant 0 : i32
    %c0_i32_0 = arith.constant 0 : i32
    return %c0_i32, %arg0 : i32, i32
  }
  func.func @transform_2(%arg0: i32) -> (i32, i32) {
    %c0_i32 = arith.constant 0 : i32
    %c0_i32_0 = arith.constant 0 : i32
    %c0_i32_1 = arith.constant 0 : i32
    return %c0_i32, %c0_i32_0 : i32, i32
  }
  func.func @transform_3(%arg0: i32) -> (i32, i32) {
    %c0_i32 = arith.constant 0 : i32
    %c0_i32_0 = arith.constant 0 : i32
    %c0_i32_1 = arith.constant 0 : i32
    return %c0_i32, %c0_i32_0 : i32, i32
  }
  func.func @transform_4(%arg0: i32) -> (i32, i32) {
    %c0_i32 = arith.constant 0 : i32
    %c0_i32_0 = arith.constant 0 : i32
    %c0_i32_1 = arith.constant 0 : i32
    return %c0_i32, %c0_i32_0 : i32, i32
  }
  func.func @transform_5(%arg0: i32) -> (i32, i32, i32) {
    %c0_i32 = arith.constant 0 : i32
    %c0_i32_0 = arith.constant 0 : i32
    %c0_i32_1 = arith.constant 0 : i32
    %c0_i32_2 = arith.constant 0 : i32
    return %c0_i32, %c0_i32_0, %c0_i32_1 : i32, i32, i32
  }
  func.func @transform_6(%arg0: i32) -> (i32, i32) {
    %c0_i32 = arith.constant 0 : i32
    %c0_i32_0 = arith.constant 0 : i32
    %c0_i32_1 = arith.constant 0 : i32
    return %c0_i32, %c0_i32_0 : i32, i32
  }
  func.func @transform_7(%arg0: i32) -> (i32, i32) {
    %c0_i32 = arith.constant 0 : i32
    %c0_i32_0 = arith.constant 0 : i32
    %c0_i32_1 = arith.constant 0 : i32
    return %c0_i32, %c0_i32_0 : i32, i32
  }
  func.func @transform_8(%arg0: i32) -> (i32, i32) {
    %c0_i32 = arith.constant 0 : i32
    %c0_i32_0 = arith.constant 0 : i32
    %c0_i32_1 = arith.constant 0 : i32
    return %c0_i32, %c0_i32_0 : i32, i32
  }
  func.func @transform_9(%arg0: i32) -> (i32, i32) {
    %c0_i32 = arith.constant 0 : i32
    %c0_i32_0 = arith.constant 0 : i32
    return %c0_i32, %arg0 : i32, i32
  }
}

</mosaic_0001>

<llo_original>
// kernel: decoder_forward_pallas.1
$region0: #{decoder_forward_pallas.1}
  #allocation0 [shape = 'u32[]', space=smem, size = 0x4, offset = 0x4, fixed_abs, tag = 'smem constant byte address 0x4 - core index']
  #allocation1 [shape = 'u32[144,128]{1,0:T(1,128)}', space=vmem, size = 0x12000, scoped, tag = 'internal scratch']
  #allocation2 [shape = 'f32[72,512]{1,0:T(8,128)}', space=vmem, size = 0x24000, scoped, tag = 'scratch operand']
  #allocation3 [shape = 'f32[24,512]{1,0:T(8,128)}', space=vmem, size = 0xc000, scoped, tag = 'scratch operand']
  %s0 = inlined_call_operand.vmem [shape: f32[9,1,512], index: 0, kind: input, shape index: {}]
  %s1 = inlined_call_operand.vmem [shape: f32[16,1024], index: 1, kind: input, shape index: {}]
  %s2 = inlined_call_operand.vmem [shape: f32[8,16], index: 2, kind: input, shape index: {}]
  %s3 = inlined_call_operand.vmem [shape: f32[8,1], index: 3, kind: input, shape index: {}]
  %s4 = inlined_call_operand.vmem [shape: f32[4,8], index: 4, kind: input, shape index: {}]
  %s5 = inlined_call_operand.vmem [shape: f32[4,8,72], index: 5, kind: input, shape index: {}]
  %s6 = inlined_call_operand.vmem [shape: f32[8,1], index: 6, kind: input, shape index: {}]
  %s7 = inlined_call_operand.vmem [shape: f32[32,24], index: 7, kind: input, shape index: {}]
  %s8 = inlined_call_operand.vmem [shape: f32[32,1], index: 8, kind: input, shape index: {}]
  %s9 = inlined_call_operand.vmem [shape: f32[32,1024], index: 9, kind: output, shape index: {}]
  %s10 = sld [smem:[#allocation0]]
  $region111: #{decoder_forward_pallas.1} parent=0
    _
  %s12 = ssub.s32 1, %s10
  %s13 = scalar_select 0, %s12, %s10
  $region1: #{decoder_forward_pallas.1} parent=0
    #allocation4 [shape = 'u8[65536]{0}', space=vmem, size = 0x10000, scoped, tag = 'input window, operand 1']
    #allocation5 [shape = 'u8[131072]{0}', space=vmem, size = 0x20000, scoped, tag = 'output window, operand 0']
    loop: start=0, step=1, limit=4
    $region2: #{decoder_forward_pallas.1} parent=1 // loop_pre_header
      _
    $region3: #{decoder_forward_pallas.1} parent=1 // loop_header
      %s15 = sphi 0, %s19
      %p16 = scmp.ge.s32.totalorder %s15, 4
      %s23 = sphi 0, %s23
      %s25 = sphi 0, %s23
      %s26 = sphi 0, %s25
      %s40 = sphi 0, %s26
      %s46 = sphi 0, %s48
      %s49 = sphi 0, %s46
      %s50 = sphi 0, %s49
      %s66 = sphi 0, %s50
      %s70 = sphi 0, %s70
      %s72 = sphi 0, %s70
      %s73 = sphi 0, %s72
      %s87 = sphi 0, %s73
      %s91 = sphi 0, %s91
      %s93 = sphi 0, %s91
      %s94 = sphi 0, %s93
      %s108 = sphi 0, %s94
      %s112 = sphi 0, %s112
      %s114 = sphi 0, %s112
      %s115 = sphi 0, %s114
      %s129 = sphi 0, %s115
      %s133 = sphi 0, %s133
      %s135 = sphi 0, %s133
      %s136 = sphi 0, %s135
      %s150 = sphi 0, %s136
      %s154 = sphi 0, %s154
      %s156 = sphi 0, %s154
      %s157 = sphi 0, %s156
      %s171 = sphi 0, %s157
      %s175 = sphi 0, %s175
      %s177 = sphi 0, %s175
      %s178 = sphi 0, %s177
      %s192 = sphi 0, %s178
      %s196 = sphi 0, %s196
      %s198 = sphi 0, %s196
      %s199 = sphi 0, %s198
      %s213 = sphi 0, %s199
      %s219 = sphi 0, %s221
      %s222 = sphi 0, %s219
      %s223 = sphi 0, %s222
      %s239 = sphi 0, %s223
    $region4: #{decoder_forward_pallas.1} parent=1 // loop_header_branch
      %18 = sbr.rel (%p16) target = $region8
    $region5: #{decoder_forward_pallas.1} parent=1 // loop_body
      %s20 = ssub.s32 %s15, 1
      %s21 = ssub.s32 %s15, 2
      %s22 = sadd.s32 %s15, 1
      %s24 = sadd.s32 %s23, 1
      %p27 = scmp.eq.s32.totalorder %s15, 1
      %p28 = scmp.ne.s32.totalorder %s23, %s25
      %p29 = scmp.eq.s32.totalorder %s15, 0
      %p30 = por %p28, %p29
      %p31 = scmp.ne.s32.totalorder %s23, %s25
      %p32 = scmp.eq.s32.totalorder %s20, 1
      %p33 = por %p31, %p32
      %p34 = scmp.ne.s32.totalorder %s25, %s26
      %p35 = scmp.eq.s32.totalorder %s20, 0
      %p36 = por %p34, %p35
      %p37 = scmp.ne.s32.totalorder %s25, %s26
      %p38 = scmp.eq.s32.totalorder %s21, 1
      %p39 = por %p37, %p38
      %p41 = scmp.ne.s32.totalorder %s26, %s40
      %p42 = scmp.eq.s32.totalorder %s21, 0
      %p43 = por %p41, %p42
      %s44 = ssub.s32 %s15, %s22
      %p45 = scmp.eq.s32.totalorder %s44, 0
      %s47 = sadd.s32 %s46, 1
      %s48 = scalar_select %p45, %s46, %s47
      %p51 = pneg %p45
      %p52 = scmp.eq.s32.totalorder %s15, 1
      %p53 = por %p51, %p52
      %p54 = scmp.ne.s32.totalorder %s46, %s49
      %p55 = scmp.eq.s32.totalorder %s15, 0
      %p56 = por %p54, %p55
      %p57 = scmp.ne.s32.totalorder %s46, %s49
      %p58 = scmp.eq.s32.totalorder %s20, 1
      %p59 = por %p57, %p58
      %p60 = scmp.ne.s32.totalorder %s49, %s50
      %p61 = scmp.eq.s32.totalorder %s20, 0
      %p62 = por %p60, %p61
      %p63 = scmp.ne.s32.totalorder %s49, %s50
      %p64 = scmp.eq.s32.totalorder %s21, 1
      %p65 = por %p63, %p64
      %p67 = scmp.ne.s32.totalorder %s50, %s66
      %p68 = scmp.eq.s32.totalorder %s21, 0
      %p69 = por %p67, %p68
      %s71 = sadd.s32 %s70, 1
      %p74 = scmp.eq.s32.totalorder %s15, 1
      %p75 = scmp.ne.s32.totalorder %s70, %s72
      %p76 = scmp.eq.s32.totalorder %s15, 0
      %p77 = por %p75, %p76
      %p78 = scmp.ne.s32.totalorder %s70, %s72
      %p79 = scmp.eq.s32.totalorder %s20, 1
      %p80 = por %p78, %p79
      %p81 = scmp.ne.s32.totalorder %s72, %s73
      %p82 = scmp.eq.s32.totalorder %s20, 0
      %p83 = por %p81, %p82
      %p84 = scmp.ne.s32.totalorder %s72, %s73
      %p85 = scmp.eq.s32.totalorder %s21, 1
      %p86 = por %p84, %p85
      %p88 = scmp.ne.s32.totalorder %s73, %s87
      %p89 = scmp.eq.s32.totalorder %s21, 0
      %p90 = por %p88, %p89
      %s92 = sadd.s32 %s91, 1
      %p95 = scmp.eq.s32.totalorder %s15, 1
      %p96 = scmp.ne.s32.totalorder %s91, %s93
      %p97 = scmp.eq.s32.totalorder %s15, 0
      %p98 = por %p96, %p97
      %p99 = scmp.ne.s32.totalorder %s91, %s93
      %p100 = scmp.eq.s32.totalorder %s20, 1
      %p101 = por %p99, %p100
      %p102 = scmp.ne.s32.totalorder %s93, %s94
      %p103 = scmp.eq.s32.totalorder %s20, 0
      %p104 = por %p102, %p103
      %p105 = scmp.ne.s32.totalorder %s93, %s94
      %p106 = scmp.eq.s32.totalorder %s21, 1
      %p107 = por %p105, %p106
      %p109 = scmp.ne.s32.totalorder %s94, %s108
      %p110 = scmp.eq.s32.totalorder %s21, 0
      %p111 = por %p109, %p110
      %s113 = sadd.s32 %s112, 1
      %p116 = scmp.eq.s32.totalorder %s15, 1
      %p117 = scmp.ne.s32.totalorder %s112, %s114
      %p118 = scmp.eq.s32.totalorder %s15, 0
      %p119 = por %p117, %p118
      %p120 = scmp.ne.s32.totalorder %s112, %s114
      %p121 = scmp.eq.s32.totalorder %s20, 1
      %p122 = por %p120, %p121
      %p123 = scmp.ne.s32.totalorder %s114, %s115
      %p124 = scmp.eq.s32.totalorder %s20, 0
      %p125 = por %p123, %p124
      %p126 = scmp.ne.s32.totalorder %s114, %s115
      %p127 = scmp.eq.s32.totalorder %s21, 1
      %p128 = por %p126, %p127
      %p130 = scmp.ne.s32.totalorder %s115, %s129
      %p131 = scmp.eq.s32.totalorder %s21, 0
      %p132 = por %p130, %p131
      %s134 = sadd.s32 %s133, 1
      %p137 = scmp.eq.s32.totalorder %s15, 1
      %p138 = scmp.ne.s32.totalorder %s133, %s135
      %p139 = scmp.eq.s32.totalorder %s15, 0
      %p140 = por %p138, %p139
      %p141 = scmp.ne.s32.totalorder %s133, %s135
      %p142 = scmp.eq.s32.totalorder %s20, 1
      %p143 = por %p141, %p142
      %p144 = scmp.ne.s32.totalorder %s135, %s136
      %p145 = scmp.eq.s32.totalorder %s20, 0
      %p146 = por %p144, %p145
      %p147 = scmp.ne.s32.totalorder %s135, %s136
      %p148 = scmp.eq.s32.totalorder %s21, 1
      %p149 = por %p147, %p148
      %p151 = scmp.ne.s32.totalorder %s136, %s150
      %p152 = scmp.eq.s32.totalorder %s21, 0
      %p153 = por %p151, %p152
      %s155 = sadd.s32 %s154, 1
      %p158 = scmp.eq.s32.totalorder %s15, 1
      %p159 = scmp.ne.s32.totalorder %s154, %s156
      %p160 = scmp.eq.s32.totalorder %s15, 0
      %p161 = por %p159, %p160
      %p162 = scmp.ne.s32.totalorder %s154, %s156
      %p163 = scmp.eq.s32.totalorder %s20, 1
      %p164 = por %p162, %p163
      %p165 = scmp.ne.s32.totalorder %s156, %s157
      %p166 = scmp.eq.s32.totalorder %s20, 0
      %p167 = por %p165, %p166
      %p168 = scmp.ne.s32.totalorder %s156, %s157
      %p169 = scmp.eq.s32.totalorder %s21, 1
      %p170 = por %p168, %p169
      %p172 = scmp.ne.s32.totalorder %s157, %s171
      %p173 = scmp.eq.s32.totalorder %s21, 0
      %p174 = por %p172, %p173
      %s176 = sadd.s32 %s175, 1
      %p179 = scmp.eq.s32.totalorder %s15, 1
      %p180 = scmp.ne.s32.totalorder %s175, %s177
      %p181 = scmp.eq.s32.totalorder %s15, 0
      %p182 = por %p180, %p181
      %p183 = scmp.ne.s32.totalorder %s175, %s177
      %p184 = scmp.eq.s32.totalorder %s20, 1
      %p185 = por %p183, %p184
      %p186 = scmp.ne.s32.totalorder %s177, %s178
      %p187 = scmp.eq.s32.totalorder %s20, 0
      %p188 = por %p186, %p187
      %p189 = scmp.ne.s32.totalorder %s177, %s178
      %p190 = scmp.eq.s32.totalorder %s21, 1
      %p191 = por %p189, %p190
      %p193 = scmp.ne.s32.totalorder %s178, %s192
      %p194 = scmp.eq.s32.totalorder %s21, 0
      %p195 = por %p193, %p194
      %s197 = sadd.s32 %s196, 1
      %p200 = scmp.eq.s32.totalorder %s15, 1
      %p201 = scmp.ne.s32.totalorder %s196, %s198
      %p202 = scmp.eq.s32.totalorder %s15, 0
      %p203 = por %p201, %p202
      %p204 = scmp.ne.s32.totalorder %s196, %s198
      %p205 = scmp.eq.s32.totalorder %s20, 1
      %p206 = por %p204, %p205
      %p207 = scmp.ne.s32.totalorder %s198, %s199
      %p208 = scmp.eq.s32.totalorder %s20, 0
      %p209 = por %p207, %p208
      %p210 = scmp.ne.s32.totalorder %s198, %s199
      %p211 = scmp.eq.s32.totalorder %s21, 1
      %p212 = por %p210, %p211
      %p214 = scmp.ne.s32.totalorder %s199, %s213
      %p215 = scmp.eq.s32.totalorder %s21, 0
      %p216 = por %p214, %p215
      %s217 = ssub.s32 %s15, %s22
      %p218 = scmp.eq.s32.totalorder %s217, 0
      %s220 = sadd.s32 %s219, 1
      %s221 = scalar_select %p218, %s219, %s220
      %p224 = pneg %p218
      %p225 = scmp.eq.s32.totalorder %s15, 1
      %p226 = por %p224, %p225
      %p227 = scmp.ne.s32.totalorder %s219, %s222
      %p228 = scmp.eq.s32.totalorder %s15, 0
      %p229 = por %p227, %p228
      %p230 = scmp.ne.s32.totalorder %s219, %s222
      %p231 = scmp.eq.s32.totalorder %s20, 1
      %p232 = por %p230, %p231
      %p233 = scmp.ne.s32.totalorder %s222, %s223
      %p234 = scmp.eq.s32.totalorder %s20, 0
      %p235 = por %p233, %p234
      %p236 = scmp.ne.s32.totalorder %s222, %s223
      %p237 = scmp.eq.s32.totalorder %s21, 1
      %p238 = por %p236, %p237
      %p240 = scmp.ne.s32.totalorder %s223, %s239
      %p241 = scmp.eq.s32.totalorder %s21, 0
      %p242 = por %p240, %p241
      %p243 = scmp.le.s32.totalorder 1, %s15
      %p244 = scmp.lt.s32.totalorder %s15, 3
      %p245 = pnand %p243, %p244
      %p246 = pneg %p245
      // Predicated region
      $region9: #{decoder_forward_pallas.1} parent=5 // pred_check
        _
      $region10: #{decoder_forward_pallas.1} parent=5 // pred_check_branch
        %248 = sbr.rel (%p245) target = $region12
      $region11: #{decoder_forward_pallas.1} parent=5 // pred_region
        %s249 = ssub.s32 %s15, 1
        // Predicated region
        $region13: #{decoder_forward_pallas.1} parent=11 // pred_check
          %p250 = pneg %p36
        $region14: #{decoder_forward_pallas.1} parent=11 // pred_check_branch
          %252 = sbr.rel (%p250) target = $region16
        $region15: #{decoder_forward_pallas.1} parent=11 // pred_region
          _
        $region16: #{decoder_forward_pallas.1} parent=11 // pred_fallthru
          _
        // Predicated region
        $region17: #{decoder_forward_pallas.1} parent=11 // pred_check
          %p253 = pneg %p83
        $region18: #{decoder_forward_pallas.1} parent=11 // pred_check_branch
          %255 = sbr.rel (%p253) target = $region20
        $region19: #{decoder_forward_pallas.1} parent=11 // pred_region
          _
        $region20: #{decoder_forward_pallas.1} parent=11 // pred_fallthru
          _
        // Predicated region
        $region21: #{decoder_forward_pallas.1} parent=11 // pred_check
          %p256 = pneg %p104
        $region22: #{decoder_forward_pallas.1} parent=11 // pred_check_branch
          %258 = sbr.rel (%p256) target = $region24
        $region23: #{decoder_forward_pallas.1} parent=11 // pred_region
          _
        $region24: #{decoder_forward_pallas.1} parent=11 // pred_fallthru
          _
        // Predicated region
        $region25: #{decoder_forward_pallas.1} parent=11 // pred_check
          %p259 = pneg %p125
        $region26: #{decoder_forward_pallas.1} parent=11 // pred_check_branch
          %261 = sbr.rel (%p259) target = $region28
        $region27: #{decoder_forward_pallas.1} parent=11 // pred_region
          _
        $region28: #{decoder_forward_pallas.1} parent=11 // pred_fallthru
          _
        // Predicated region
        $region29: #{decoder_forward_pallas.1} parent=11 // pred_check
          %p262 = pneg %p146
        $region30: #{decoder_forward_pallas.1} parent=11 // pred_check_branch
          %264 = sbr.rel (%p262) target = $region32
        $region31: #{decoder_forward_pallas.1} parent=11 // pred_region
          _
        $region32: #{decoder_forward_pallas.1} parent=11 // pred_fallthru
          _
        // Predicated region
        $region33: #{decoder_forward_pallas.1} parent=11 // pred_check
          %p265 = pneg %p167
        $region34: #{decoder_forward_pallas.1} parent=11 // pred_check_branch
          %267 = sbr.rel (%p265) target = $region36
        $region35: #{decoder_forward_pallas.1} parent=11 // pred_region
          _
        $region36: #{decoder_forward_pallas.1} parent=11 // pred_fallthru
          _
        // Predicated region
        $region37: #{decoder_forward_pallas.1} parent=11 // pred_check
          %p268 = pneg %p188
        $region38: #{decoder_forward_pallas.1} parent=11 // pred_check_branch
          %270 = sbr.rel (%p268) target = $region40
        $region39: #{decoder_forward_pallas.1} parent=11 // pred_region
          _
        $region40: #{decoder_forward_pallas.1} parent=11 // pred_fallthru
          _
        // Predicated region
        $region41: #{decoder_forward_pallas.1} parent=11 // pred_check
          %p271 = pneg %p209
        $region42: #{decoder_forward_pallas.1} parent=11 // pred_check_branch
          %273 = sbr.rel (%p271) target = $region44
        $region43: #{decoder_forward_pallas.1} parent=11 // pred_region
          _
        $region44: #{decoder_forward_pallas.1} parent=11 // pred_fallthru
          _
      $region12: #{decoder_forward_pallas.1} parent=5 // pred_fallthru
        _
      %p274 = scmp.lt.s32.totalorder %s15, 2
      // Predicated region
      $region45: #{decoder_forward_pallas.1} parent=5 // pred_check
        %p275 = pneg %p274
      $region46: #{decoder_forward_pallas.1} parent=5 // pred_check_branch
        %277 = sbr.rel (%p275) target = $region48
      $region47: #{decoder_forward_pallas.1} parent=5 // pred_region
        // Predicated region
        $region49: #{decoder_forward_pallas.1} parent=47 // pred_check
          %p278 = pneg %p56
        $region50: #{decoder_forward_pallas.1} parent=47 // pred_check_branch
          %280 = sbr.rel (%p278) target = $region52
        $region51: #{decoder_forward_pallas.1} parent=47 // pred_region
          %s281 = sand.u32 %s46, 1
          %s282 = sand.u32 %s46, 1
          %s283 = smul.addr %s282, 64
          %s284 = scalar_lea.vmem [#allocation4], %s283
          %s285 = smul.u32 4, %s15
          %s286 = smul.addr %s285, 8
          %s287 = scalar_lea.vmem %s1, %s286
          // Predicated region
          $region53: #{decoder_forward_pallas.1} parent=51 // pred_check
            _
          $region54: #{decoder_forward_pallas.1} parent=51 // pred_check_branch
            %289 = sbr.rel (0) target = $region56
          $region55: #{decoder_forward_pallas.1} parent=51 // pred_region
            // Predicated region
            $region57: #{decoder_forward_pallas.1} parent=55 // pred_check
              _
            $region58: #{decoder_forward_pallas.1} parent=55 // pred_check_branch
              %291 = sbr.rel (0) target = $region60
            $region59: #{decoder_forward_pallas.1} parent=55 // pred_region
              loop: start=0, step=1, limit=1
              $region61: #{decoder_forward_pallas.1} parent=59 // loop_pre_header
                _
              $region62: #{decoder_forward_pallas.1} parent=59 // loop_header
                %s293 = sphi 0, %s297
                %p294 = scmp.ge.s32.totalorder %s293, 1
                %s298 = sphi %s287, %s287
                %s299 = sphi %s284, %s284
              $region63: #{decoder_forward_pallas.1} parent=59 // loop_header_branch
                %296 = sbr.rel (%p294) target = $region67
              $region64: #{decoder_forward_pallas.1} parent=59 // loop_body
                %v300 = vld [vmem:[%s298] sm:$0xff]
                %301 = vst [vmem:[%s299] sm:$0xff] %v300
                %v302 = vld [vmem:[%s298 + $0x8] sm:$0xff]
                %303 = vst [vmem:[%s299 + $0x8] sm:$0xff] %v302
                %v304 = vld [vmem:[%s298 + $0x10] sm:$0xff]
                %305 = vst [vmem:[%s299 + $0x10] sm:$0xff] %v304
                %v306 = vld [vmem:[%s298 + $0x18] sm:$0xff]
                %307 = vst [vmem:[%s299 + $0x18] sm:$0xff] %v306
                %v308 = vld [vmem:[%s298 + $0x40] sm:$0xff]
                %309 = vst [vmem:[%s299 + $0x20] sm:$0xff] %v308
                %v310 = vld [vmem:[%s298 + $0x48] sm:$0xff]
                %311 = vst [vmem:[%s299 + $0x28] sm:$0xff] %v310
                %v312 = vld [vmem:[%s298 + $0x50] sm:$0xff]
                %313 = vst [vmem:[%s299 + $0x30] sm:$0xff] %v312
                %v314 = vld [vmem:[%s298 + $0x58] sm:$0xff]
                %315 = vst [vmem:[%s299 + $0x38] sm:$0xff] %v314
              $region65: #{decoder_forward_pallas.1} parent=59 // loop_footer
                %s297 = sadd.s32 1, %s293
              $region66: #{decoder_forward_pallas.1} parent=59 // loop_footer_branch
                %292 = sbr.rel target = $region62
              $region67: #{decoder_forward_pallas.1} parent=59 // loop_exit
                _
            $region60: #{decoder_forward_pallas.1} parent=55 // pred_fallthru
              _
            // Predicated region
            $region68: #{decoder_forward_pallas.1} parent=55 // pred_check
              _
            $region69: #{decoder_forward_pallas.1} parent=55 // pred_check_branch
              %317 = sbr.rel target = $region71
            $region70: #{decoder_forward_pallas.1} parent=55 // pred_region
              _
            $region71: #{decoder_forward_pallas.1} parent=55 // pred_fallthru
              _
          $region56: #{decoder_forward_pallas.1} parent=51 // pred_fallthru
            _
          %318 = vnop
        $region52: #{decoder_forward_pallas.1} parent=47 // pred_fallthru
          _
      $region48: #{decoder_forward_pallas.1} parent=5 // pred_fallthru
        _
      %p319 = scmp.le.s32.totalorder 1, %s15
      %p320 = scmp.lt.s32.totalorder %s15, 3
      %p321 = pnand %p319, %p320
      %p322 = pneg %p321
      // Predicated region
      $region72: #{decoder_forward_pallas.1} parent=5 // pred_check
        _
      $region73: #{decoder_forward_pallas.1} parent=5 // pred_check_branch
        %324 = sbr.rel (%p321) target = $region75
      $region74: #{decoder_forward_pallas.1} parent=5 // pred_region
        %s325 = ssub.s32 %s15, 1
        %s326 = sand.u32 %s49, 1
        %s327 = sand.u32 %s49, 1
        %s328 = smul.addr %s327, 64
        %s329 = scalar_lea.vmem [#allocation4], %s328
        // Predicated region
        $region76: #{decoder_forward_pallas.1} parent=74 // pred_check
          %p330 = pneg %p62
        $region77: #{decoder_forward_pallas.1} parent=74 // pred_check_branch
          %332 = sbr.rel (%p330) target = $region79
        $region78: #{decoder_forward_pallas.1} parent=74 // pred_region
          _
        $region79: #{decoder_forward_pallas.1} parent=74 // pred_fallthru
          _
        %p333 = pneg %p36
        %p334 = pneg %p33
        %s335 = sand.u32 %s49, 1
        %s336 = sand.u32 %s49, 1
        %s337 = smul.addr %s336, 64
        %s338 = scalar_lea.vmem [#allocation4], %s337
        %p339 = pneg %p62
        %p340 = pneg %p59
        %p341 = pneg %p83
        %p342 = pneg %p80
        %p343 = pneg %p104
        %p344 = pneg %p101
        %p345 = pneg %p125
        %p346 = pneg %p122
        %p347 = pneg %p146
        %p348 = pneg %p143
        %p349 = pneg %p167
        %p350 = pneg %p164
        %p351 = pneg %p188
        %p352 = pneg %p185
        %p353 = pneg %p209
        %p354 = pneg %p206
        %p355 = pneg %p235
        %p356 = pneg %p232
        %s357 = sand.u32 %s222, 1
        %s358 = sand.u32 %s222, 1
        %s359 = smul.addr %s358, 128
        %s360 = scalar_lea.vmem [#allocation5], %s359
        %s361 = smul.u32 4, %s20
        %s362 = smul.u32 4, %s20
        %v363 = vld [vmem:[%s329] sm:$0xff]
        %v364 = vld [vmem:[%s329 + $0x8] sm:$0xff]
        %v365 = vld [vmem:[%s329 + $0x10] sm:$0xff]
        %v366 = vld [vmem:[%s329 + $0x18] sm:$0xff]
        %v367 = vld [vmem:[%s329 + $0x20] sm:$0xff]
        %v368 = vld [vmem:[%s329 + $0x28] sm:$0xff]
        %v369 = vld [vmem:[%s329 + $0x30] sm:$0xff]
        %v370 = vld [vmem:[%s329 + $0x38] sm:$0xff]
        %v371 = vld [vmem:[%s2] sm:$0xff]
        %v372 = vld [vmem:[%s3] sm:$0xff]
        %374 = vset.pattern.permute.xlu0 0
        %375 = vperm.xlu0 %374, %v372
        %v376 = vpop.permute.xlu0 %375
        %vm378 = vcmask 130048
        %v380 = vsel %vm378, %v371, 0
        %382 = vmatprep.subr.mxu0 %v364
        %383 = vmatpush1.msra.mxu0 %v363
        %384 = vmatprep.subr.mxu0 %v368
        %385 = vmatpush1.msra.mxu0 %v367
        %386 = vmatprep.subr.mxu0 0.0
        %387 = vmatpush1.msra.mxu0 0.0
        %388 = vmatprep.subr.mxu0 0.0
        %389 = vmatpush1.msra.mxu0 0.0
        %390 = vmatprep.subr.mxu0 0.0
        %391 = vmatpush1.msra.mxu0 0.0
        %392 = vmatprep.subr.mxu0 0.0
        %393 = vmatpush1.msra.mxu0 0.0
        %394 = vmatprep.subr.mxu0 0.0
        %395 = vmatpush1.msra.mxu0 0.0
        %396 = vmatprep.subr.mxu0 0.0
        %397 = vmatpush1.msra.mxu0 0.0
        %398 = vmatprep.subr.mxu0 0.0
        %399 = vmatpush1.msra.mxu0 0.0
        %400 = vmatprep.subr.mxu0 0.0
        %401 = vmatpush1.msra.mxu0 0.0
        %402 = vmatprep.subr.mxu0 0.0
        %403 = vmatpush1.msra.mxu0 0.0
        %404 = vmatprep.subr.mxu0 0.0
        %405 = vmatpush1.msra.mxu0 0.0
        %406 = vmatprep.subr.mxu0 0.0
        %407 = vmatpush1.msra.mxu0 0.0
        %408 = vmatprep.subr.mxu0 0.0
        %409 = vmatpush1.msra.mxu0 0.0
        %410 = vmatprep.subr.mxu0 0.0
        %411 = vmatpush1.msra.mxu0 0.0
        %412 = vmatprep.subr.mxu0 0.0
        %413 = vmatpush1.msra.mxu0 0.0
        %414 = vmatprep.subr.mxu0 0.0
        %415 = vmatpush1.msra.mxu0 0.0
        %416 = vmatprep.subr.mxu0 0.0
        %417 = vmatpush1.msra.mxu0 0.0
        %418 = vmatprep.subr.mxu0 0.0
        %419 = vmatpush1.msra.mxu0 0.0
        %420 = vmatprep.subr.mxu0 0.0
        %421 = vmatpush1.msra.mxu0 0.0
        %422 = vmatprep.subr.mxu0 0.0
        %423 = vmatpush1.msra.mxu0 0.0
        %424 = vmatprep.subr.mxu0 0.0
        %425 = vmatpush1.msra.mxu0 0.0
        %426 = vmatprep.subr.mxu0 0.0
        %427 = vmatpush1.msra.mxu0 0.0
        %428 = vmatprep.subr.mxu0 0.0
        %429 = vmatpush1.msra.mxu0 0.0
        %430 = vmatprep.subr.mxu0 0.0
        %431 = vmatpush1.msra.mxu0 0.0
        %432 = vmatprep.subr.mxu0 0.0
        %433 = vmatpush1.msra.mxu0 0.0
        %434 = vmatprep.subr.mxu0 0.0
        %435 = vmatpush1.msra.mxu0 0.0
        %436 = vmatprep.subr.mxu0 0.0
        %437 = vmatpush1.msra.mxu0 0.0
        %438 = vmatprep.subr.mxu0 0.0
        %439 = vmatpush1.msra.mxu0 0.0
        %440 = vmatprep.subr.mxu0 0.0
        %441 = vmatpush1.msra.mxu0 0.0
        %442 = vmatprep.subr.mxu0 0.0
        %443 = vmatpush1.msra.mxu0 0.0
        %444 = vmatprep.subr.mxu0 0.0
        %445 = vmatpush1.msra.mxu0 0.0
        %446 = vmatprep.mubr.f32.mxu0 0.0
        %447 = vmatmul.mubr.f32.gmra.mrb[0].mxu0 %v380
        %v448 = vpop.f32.mrb[0].mxu0
        %v449 = vadd.f32 %v376, %v448
        %v450 = vpop.f32.mrb[0].mxu0
        %v451 = vadd.f32 %v376, %v450
        %452 = vdwg.mxu0
        %453 = vmatprep.subr.mxu0 %v366
        %454 = vmatpush1.msra.mxu0 %v365
        %455 = vmatprep.subr.mxu0 %v370
        %456 = vmatpush1.msra.mxu0 %v369
        %457 = vmatprep.subr.mxu0 0.0
        %458 = vmatpush1.msra.mxu0 0.0
        %459 = vmatprep.subr.mxu0 0.0
        %460 = vmatpush1.msra.mxu0 0.0
        %461 = vmatprep.subr.mxu0 0.0
        %462 = vmatpush1.msra.mxu0 0.0
        %463 = vmatprep.subr.mxu0 0.0
        %464 = vmatpush1.msra.mxu0 0.0
        %465 = vmatprep.subr.mxu0 0.0
        %466 = vmatpush1.msra.mxu0 0.0
        %467 = vmatprep.subr.mxu0 0.0
        %468 = vmatpush1.msra.mxu0 0.0
        %469 = vmatprep.subr.mxu0 0.0
        %470 = vmatpush1.msra.mxu0 0.0
        %471 = vmatprep.subr.mxu0 0.0
        %472 = vmatpush1.msra.mxu0 0.0
        %473 = vmatprep.subr.mxu0 0.0
        %474 = vmatpush1.msra.mxu0 0.0
        %475 = vmatprep.subr.mxu0 0.0
        %476 = vmatpush1.msra.mxu0 0.0
        %477 = vmatprep.subr.mxu0 0.0
        %478 = vmatpush1.msra.mxu0 0.0
        %479 = vmatprep.subr.mxu0 0.0
        %480 = vmatpush1.msra.mxu0 0.0
        %481 = vmatprep.subr.mxu0 0.0
        %482 = vmatpush1.msra.mxu0 0.0
        %483 = vmatprep.subr.mxu0 0.0
        %484 = vmatpush1.msra.mxu0 0.0
        %485 = vmatprep.subr.mxu0 0.0
        %486 = vmatpush1.msra.mxu0 0.0
        %487 = vmatprep.subr.mxu0 0.0
        %488 = vmatpush1.msra.mxu0 0.0
        %489 = vmatprep.subr.mxu0 0.0
        %490 = vmatpush1.msra.mxu0 0.0
        %491 = vmatprep.subr.mxu0 0.0
        %492 = vmatpush1.msra.mxu0 0.0
        %493 = vmatprep.subr.mxu0 0.0
        %494 = vmatpush1.msra.mxu0 0.0
        %495 = vmatprep.subr.mxu0 0.0
        %496 = vmatpush1.msra.mxu0 0.0
        %497 = vmatprep.subr.mxu0 0.0
        %498 = vmatpush1.msra.mxu0 0.0
        %499 = vmatprep.subr.mxu0 0.0
        %500 = vmatpush1.msra.mxu0 0.0
        %501 = vmatprep.subr.mxu0 0.0
        %502 = vmatpush1.msra.mxu0 0.0
        %503 = vmatprep.subr.mxu0 0.0
        %504 = vmatpush1.msra.mxu0 0.0
        %505 = vmatprep.subr.mxu0 0.0
        %506 = vmatpush1.msra.mxu0 0.0
        %507 = vmatprep.subr.mxu0 0.0
        %508 = vmatpush1.msra.mxu0 0.0
        %509 = vmatprep.subr.mxu0 0.0
        %510 = vmatpush1.msra.mxu0 0.0
        %511 = vmatprep.subr.mxu0 0.0
        %512 = vmatpush1.msra.mxu0 0.0
        %513 = vmatprep.subr.mxu0 0.0
        %514 = vmatpush1.msra.mxu0 0.0
        %515 = vmatprep.subr.mxu0 0.0
        %516 = vmatpush1.msra.mxu0 0.0
        %517 = vmatprep.mubr.f32.mxu0 0.0
        %518 = vmatmul.mubr.f32.gmra.mrb[0].mxu0 %v380
        %v519 = vpop.f32.mrb[0].mxu0
        %v520 = vadd.f32 %v376, %v519
        %v521 = vpop.f32.mrb[0].mxu0
        %v522 = vadd.f32 %v376, %v521
        %523 = vdwg.mxu0
        %v524 = vmax.f32 %v449, 0.0
        %v525 = vmax.f32 %v451, 0.0
        %v526 = vmax.f32 %v520, 0.0
        %v527 = vmax.f32 %v522, 0.0
        %528 = vst [vmem:[#allocation3 + $0x20] sm:$0xff] %v363
        %529 = vst [vmem:[#allocation3 + $0x28] sm:$0xff] %v364
        %530 = vst [vmem:[#allocation3 + $0x30] sm:$0xff] %v365
        %531 = vst [vmem:[#allocation3 + $0x38] sm:$0xff] %v366
        %532 = vst [vmem:[#allocation3 + $0x40] sm:$0xff] %v367
        %533 = vst [vmem:[#allocation3 + $0x48] sm:$0xff] %v368
        %534 = vst [vmem:[#allocation3 + $0x50] sm:$0xff] %v369
        %535 = vst [vmem:[#allocation3 + $0x58] sm:$0xff] %v370
        %536 = vrot.lane.b32.xlu0 %v524, 17
        %v537 = vpop.permute.xlu0 %536
        %538 = vrot.lane.b32.xlu0 %v525, 17
        %v539 = vpop.permute.xlu0 %538
        %540 = vrot.lane.b32.xlu0 %v526, 17
        %v541 = vpop.permute.xlu0 %540
        %542 = vrot.lane.b32.xlu0 %v527, 17
        %v543 = vpop.permute.xlu0 %542
        %v544 = vlaneseq
        %v545 = vand.u32 %v544, 127
        %vm546 = vcmp.lt.s32.totalorder %v545, 17
        %v547 = vsel %vm546, %v541, %v543
        %v548 = vsel %vm546, %v539, %v541
        %v549 = vsel %vm546, %v537, %v539
        %v550 = vsel %vm546, %v543, %v537
        %v551 = vld [vmem:[%s0] sm:$0xf]
        %v553 = vlaneseq
        %v554 = vshrl.u32 %v553, 7
        %v555 = vsub.s32 0, %v554
        %v556 = vrot.slane %v551, %v555
        %v557 = vlaneseq
        %v558 = vshrl.u32 %v557, 7
        %v559 = vsub.s32 1, %v558
        %v560 = vrot.slane %v551, %v559
        %v561 = vlaneseq
        %v562 = vshrl.u32 %v561, 7
        %v563 = vsub.s32 2, %v562
        %v564 = vrot.slane %v551, %v563
        %v565 = vlaneseq
        %v566 = vshrl.u32 %v565, 7
        %v567 = vsub.s32 3, %v566
        %v568 = vrot.slane %v551, %v567
        %v573 = vmul.f32 %v550, %v556
        %v574 = vmul.f32 %v549, %v560
        %v575 = vmul.f32 %v548, %v564
        %v576 = vmul.f32 %v547, %v568
        %577 = vst [vmem:[#allocation2] sm:$0xff] %v573
        %578 = vst [vmem:[#allocation2 + $0x8] sm:$0xff] %v574
        %579 = vst [vmem:[#allocation2 + $0x10] sm:$0xff] %v575
        %580 = vst [vmem:[#allocation2 + $0x18] sm:$0xff] %v576
        %581 = vrot.lane.b32.xlu0 %v524, 16
        %v582 = vpop.permute.xlu0 %581
        %583 = vrot.lane.b32.xlu0 %v525, 16
        %v584 = vpop.permute.xlu0 %583
        %585 = vrot.lane.b32.xlu0 %v526, 16
        %v586 = vpop.permute.xlu0 %585
        %587 = vrot.lane.b32.xlu0 %v527, 16
        %v588 = vpop.permute.xlu0 %587
        %vm589 = vcmp.lt.s32.totalorder %v545, 16
        %v590 = vsel %vm589, %v586, %v588
        %v591 = vsel %vm589, %v584, %v586
        %v592 = vsel %vm589, %v582, %v584
        %v593 = vsel %vm589, %v588, %v582
        %s594 = scalar_lea.vmem %s0, 4
        %v595 = vld [vmem:[%s594] sm:$0xf]
        %v597 = vlaneseq
        %v598 = vshrl.u32 %v597, 7
        %v599 = vsub.s32 0, %v598
        %v600 = vrot.slane %v595, %v599
        %v601 = vlaneseq
        %v602 = vshrl.u32 %v601, 7
        %v603 = vsub.s32 1, %v602
        %v604 = vrot.slane %v595, %v603
        %v605 = vlaneseq
        %v606 = vshrl.u32 %v605, 7
        %v607 = vsub.s32 2, %v606
        %v608 = vrot.slane %v595, %v607
        %v609 = vlaneseq
        %v610 = vshrl.u32 %v609, 7
        %v611 = vsub.s32 3, %v610
        %v612 = vrot.slane %v595, %v611
        %v617 = vmul.f32 %v593, %v600
        %v618 = vmul.f32 %v592, %v604
        %v619 = vmul.f32 %v591, %v608
        %v620 = vmul.f32 %v590, %v612
        %621 = vst [vmem:[#allocation2 + $0x20] sm:$0xff] %v617
        %622 = vst [vmem:[#allocation2 + $0x28] sm:$0xff] %v618
        %623 = vst [vmem:[#allocation2 + $0x30] sm:$0xff] %v619
        %624 = vst [vmem:[#allocation2 + $0x38] sm:$0xff] %v620
        %625 = vrot.lane.b32.xlu0 %v524, 15
        %v626 = vpop.permute.xlu0 %625
        %627 = vrot.lane.b32.xlu0 %v525, 15
        %v628 = vpop.permute.xlu0 %627
        %629 = vrot.lane.b32.xlu0 %v526, 15
        %v630 = vpop.permute.xlu0 %629
        %631 = vrot.lane.b32.xlu0 %v527, 15
        %v632 = vpop.permute.xlu0 %631
        %vm633 = vcmp.lt.s32.totalorder %v545, 15
        %v634 = vsel %vm633, %v630, %v632
        %v635 = vsel %vm633, %v628, %v630
        %v636 = vsel %vm633, %v626, %v628
        %v637 = vsel %vm633, %v632, %v626
        %s638 = scalar_lea.vmem %s0, 8
        %v639 = vld [vmem:[%s638] sm:$0xf]
        %v641 = vlaneseq
        %v642 = vshrl.u32 %v641, 7
        %v643 = vsub.s32 0, %v642
        %v644 = vrot.slane %v639, %v643
        %v645 = vlaneseq
        %v646 = vshrl.u32 %v645, 7
        %v647 = vsub.s32 1, %v646
        %v648 = vrot.slane %v639, %v647
        %v649 = vlaneseq
        %v650 = vshrl.u32 %v649, 7
        %v651 = vsub.s32 2, %v650
        %v652 = vrot.slane %v639, %v651
        %v653 = vlaneseq
        %v654 = vshrl.u32 %v653, 7
        %v655 = vsub.s32 3, %v654
        %v656 = vrot.slane %v639, %v655
        %v661 = vmul.f32 %v637, %v644
        %v662 = vmul.f32 %v636, %v648
        %v663 = vmul.f32 %v635, %v652
        %v664 = vmul.f32 %v634, %v656
        %665 = vst [vmem:[#allocation2 + $0x40] sm:$0xff] %v661
        %666 = vst [vmem:[#allocation2 + $0x48] sm:$0xff] %v662
        %667 = vst [vmem:[#allocation2 + $0x50] sm:$0xff] %v663
        %668 = vst [vmem:[#allocation2 + $0x58] sm:$0xff] %v664
        %669 = vrot.lane.b32.xlu0 %v524, 1
        %v670 = vpop.permute.xlu0 %669
        %671 = vrot.lane.b32.xlu0 %v525, 1
        %v672 = vpop.permute.xlu0 %671
        %673 = vrot.lane.b32.xlu0 %v526, 1
        %v674 = vpop.permute.xlu0 %673
        %675 = vrot.lane.b32.xlu0 %v527, 1
        %v676 = vpop.permute.xlu0 %675
        %vm677 = vcmp.lt.s32.totalorder %v545, 1
        %v678 = vsel %vm677, %v674, %v676
        %v679 = vsel %vm677, %v672, %v674
        %v680 = vsel %vm677, %v670, %v672
        %v681 = vsel %vm677, %v676, %v670
        %s682 = scalar_lea.vmem %s0, 12
        %v683 = vld [vmem:[%s682] sm:$0xf]
        %v685 = vlaneseq
        %v686 = vshrl.u32 %v685, 7
        %v687 = vsub.s32 0, %v686
        %v688 = vrot.slane %v683, %v687
        %v689 = vlaneseq
        %v690 = vshrl.u32 %v689, 7
        %v691 = vsub.s32 1, %v690
        %v692 = vrot.slane %v683, %v691
        %v693 = vlaneseq
        %v694 = vshrl.u32 %v693, 7
        %v695 = vsub.s32 2, %v694
        %v696 = vrot.slane %v683, %v695
        %v697 = vlaneseq
        %v698 = vshrl.u32 %v697, 7
        %v699 = vsub.s32 3, %v698
        %v700 = vrot.slane %v683, %v699
        %v705 = vmul.f32 %v681, %v688
        %v706 = vmul.f32 %v680, %v692
        %v707 = vmul.f32 %v679, %v696
        %v708 = vmul.f32 %v678, %v700
        %709 = vst [vmem:[#allocation2 + $0x60] sm:$0xff] %v705
        %710 = vst [vmem:[#allocation2 + $0x68] sm:$0xff] %v706
        %711 = vst [vmem:[#allocation2 + $0x70] sm:$0xff] %v707
        %712 = vst [vmem:[#allocation2 + $0x78] sm:$0xff] %v708
        %713 = vst [vmem:[#allocation2 + $0x80] sm:$0xff] %v524
        %714 = vst [vmem:[#allocation2 + $0x88] sm:$0xff] %v525
        %715 = vst [vmem:[#allocation2 + $0x90] sm:$0xff] %v526
        %716 = vst [vmem:[#allocation2 + $0x98] sm:$0xff] %v527
        %717 = vrot.lane.b32.xlu0 %v524, 127
        %v718 = vpop.permute.xlu0 %717
        %719 = vrot.lane.b32.xlu0 %v525, 127
        %v720 = vpop.permute.xlu0 %719
        %721 = vrot.lane.b32.xlu0 %v526, 127
        %v722 = vpop.permute.xlu0 %721
        %723 = vrot.lane.b32.xlu0 %v527, 127
        %v724 = vpop.permute.xlu0 %723
        %vm725 = vcmp.lt.s32.totalorder %v545, 127
        %v726 = vsel %vm725, %v722, %v724
        %v727 = vsel %vm725, %v720, %v722
        %v728 = vsel %vm725, %v718, %v720
        %v729 = vsel %vm725, %v724, %v718
        %s730 = scalar_lea.vmem %s0, 20
        %v731 = vld [vmem:[%s730] sm:$0xf]
        %v733 = vlaneseq
        %v734 = vshrl.u32 %v733, 7
        %v735 = vsub.s32 0, %v734
        %v736 = vrot.slane %v731, %v735
        %v737 = vlaneseq
        %v738 = vshrl.u32 %v737, 7
        %v739 = vsub.s32 1, %v738
        %v740 = vrot.slane %v731, %v739
        %v741 = vlaneseq
        %v742 = vshrl.u32 %v741, 7
        %v743 = vsub.s32 2, %v742
        %v744 = vrot.slane %v731, %v743
        %v745 = vlaneseq
        %v746 = vshrl.u32 %v745, 7
        %v747 = vsub.s32 3, %v746
        %v748 = vrot.slane %v731, %v747
        %v753 = vmul.f32 %v728, %v736
        %v754 = vmul.f32 %v727, %v740
        %v755 = vmul.f32 %v726, %v744
        %v756 = vmul.f32 %v729, %v748
        %757 = vst [vmem:[#allocation2 + $0xa0] sm:$0xff] %v753
        %758 = vst [vmem:[#allocation2 + $0xa8] sm:$0xff] %v754
        %759 = vst [vmem:[#allocation2 + $0xb0] sm:$0xff] %v755
        %760 = vst [vmem:[#allocation2 + $0xb8] sm:$0xff] %v756
        %761 = vrot.lane.b32.xlu0 %v524, 113
        %v762 = vpop.permute.xlu0 %761
        %763 = vrot.lane.b32.xlu0 %v525, 113
        %v764 = vpop.permute.xlu0 %763
        %765 = vrot.lane.b32.xlu0 %v526, 113
        %v766 = vpop.permute.xlu0 %765
        %767 = vrot.lane.b32.xlu0 %v527, 113
        %v768 = vpop.permute.xlu0 %767
        %vm769 = vcmp.lt.s32.totalorder %v545, 113
        %v770 = vsel %vm769, %v766, %v768
        %v771 = vsel %vm769, %v764, %v766
        %v772 = vsel %vm769, %v762, %v764
        %v773 = vsel %vm769, %v768, %v762
        %s774 = scalar_lea.vmem %s0, 24
        %v775 = vld [vmem:[%s774] sm:$0xf]
        %v777 = vlaneseq
        %v778 = vshrl.u32 %v777, 7
        %v779 = vsub.s32 0, %v778
        %v780 = vrot.slane %v775, %v779
        %v781 = vlaneseq
        %v782 = vshrl.u32 %v781, 7
        %v783 = vsub.s32 1, %v782
        %v784 = vrot.slane %v775, %v783
        %v785 = vlaneseq
        %v786 = vshrl.u32 %v785, 7
        %v787 = vsub.s32 2, %v786
        %v788 = vrot.slane %v775, %v787
        %v789 = vlaneseq
        %v790 = vshrl.u32 %v789, 7
        %v791 = vsub.s32 3, %v790
        %v792 = vrot.slane %v775, %v791
        %v797 = vmul.f32 %v772, %v780
        %v798 = vmul.f32 %v771, %v784
        %v799 = vmul.f32 %v770, %v788
        %v800 = vmul.f32 %v773, %v792
        %801 = vst [vmem:[#allocation2 + $0xc0] sm:$0xff] %v797
        %802 = vst [vmem:[#allocation2 + $0xc8] sm:$0xff] %v798
        %803 = vst [vmem:[#allocation2 + $0xd0] sm:$0xff] %v799
        %804 = vst [vmem:[#allocation2 + $0xd8] sm:$0xff] %v800
        %805 = vrot.lane.b32.xlu0 %v524, 112
        %v806 = vpop.permute.xlu0 %805
        %807 = vrot.lane.b32.xlu0 %v525, 112
        %v808 = vpop.permute.xlu0 %807
        %809 = vrot.lane.b32.xlu0 %v526, 112
        %v810 = vpop.permute.xlu0 %809
        %811 = vrot.lane.b32.xlu0 %v527, 112
        %v812 = vpop.permute.xlu0 %811
        %vm813 = vcmp.lt.s32.totalorder %v545, 112
        %v814 = vsel %vm813, %v810, %v812
        %v815 = vsel %vm813, %v808, %v810
        %v816 = vsel %vm813, %v806, %v808
        %v817 = vsel %vm813, %v812, %v806
        %s818 = scalar_lea.vmem %s0, 28
        %v819 = vld [vmem:[%s818] sm:$0xf]
        %v821 = vlaneseq
        %v822 = vshrl.u32 %v821, 7
        %v823 = vsub.s32 0, %v822
        %v824 = vrot.slane %v819, %v823
        %v825 = vlaneseq
        %v826 = vshrl.u32 %v825, 7
        %v827 = vsub.s32 1, %v826
        %v828 = vrot.slane %v819, %v827
        %v829 = vlaneseq
        %v830 = vshrl.u32 %v829, 7
        %v831 = vsub.s32 2, %v830
        %v832 = vrot.slane %v819, %v831
        %v833 = vlaneseq
        %v834 = vshrl.u32 %v833, 7
        %v835 = vsub.s32 3, %v834
        %v836 = vrot.slane %v819, %v835
        %v841 = vmul.f32 %v816, %v824
        %v842 = vmul.f32 %v815, %v828
        %v843 = vmul.f32 %v814, %v832
        %v844 = vmul.f32 %v817, %v836
        %845 = vst [vmem:[#allocation2 + $0xe0] sm:$0xff] %v841
        %846 = vst [vmem:[#allocation2 + $0xe8] sm:$0xff] %v842
        %847 = vst [vmem:[#allocation2 + $0xf0] sm:$0xff] %v843
        %848 = vst [vmem:[#allocation2 + $0xf8] sm:$0xff] %v844
        %849 = vrot.lane.b32.xlu0 %v524, 111
        %v850 = vpop.permute.xlu0 %849
        %851 = vrot.lane.b32.xlu0 %v525, 111
        %v852 = vpop.permute.xlu0 %851
        %853 = vrot.lane.b32.xlu0 %v526, 111
        %v854 = vpop.permute.xlu0 %853
        %855 = vrot.lane.b32.xlu0 %v527, 111
        %v856 = vpop.permute.xlu0 %855
        %vm857 = vcmp.lt.s32.totalorder %v545, 111
        %v858 = vsel %vm857, %v854, %v856
        %v859 = vsel %vm857, %v852, %v854
        %v860 = vsel %vm857, %v850, %v852
        %v861 = vsel %vm857, %v856, %v850
        %s862 = scalar_lea.vmem %s0, 32
        %v863 = vld [vmem:[%s862] sm:$0xf]
        %v865 = vlaneseq
        %v866 = vshrl.u32 %v865, 7
        %v867 = vsub.s32 0, %v866
        %v868 = vrot.slane %v863, %v867
        %v869 = vlaneseq
        %v870 = vshrl.u32 %v869, 7
        %v871 = vsub.s32 1, %v870
        %v872 = vrot.slane %v863, %v871
        %v873 = vlaneseq
        %v874 = vshrl.u32 %v873, 7
        %v875 = vsub.s32 2, %v874
        %v876 = vrot.slane %v863, %v875
        %v877 = vlaneseq
        %v878 = vshrl.u32 %v877, 7
        %v879 = vsub.s32 3, %v878
        %v880 = vrot.slane %v863, %v879
        %v885 = vmul.f32 %v860, %v868
        %v886 = vmul.f32 %v859, %v872
        %v887 = vmul.f32 %v858, %v876
        %v888 = vmul.f32 %v861, %v880
        %889 = vst [vmem:[#allocation2 + $0x100] sm:$0xff] %v885
        %890 = vst [vmem:[#allocation2 + $0x108] sm:$0xff] %v886
        %891 = vst [vmem:[#allocation2 + $0x110] sm:$0xff] %v887
        %892 = vst [vmem:[#allocation2 + $0x118] sm:$0xff] %v888
        %v893 = vld [vmem:[%s4] sm:$0xf]
        %v894 = vld [vmem:[%s5] sm:$0xff]
        %v895 = vld [vmem:[%s5 + $0x8] sm:$0xff]
        %v896 = vld [vmem:[%s5 + $0x10] sm:$0xff]
        %v897 = vld [vmem:[%s5 + $0x18] sm:$0xff]
        %v898 = vadd.f32 %v524, %v525
        %899 = vadd.xlane.f32.xlu0 %v898
        %v900 = vpop.xlane.xlu0 %899
        %v901 = vrcp.pop 256.0
        %v902 = vmul.f32 %v900, %v901
        %vm903 = vcmask 64512
        %v905 = vsel %vm903, %v893, 0
        %907 = vmatprep.subr.mxu0 0.0
        %908 = vmatpush1.msra.mxu0 %v902
        %909 = vmatprep.subr.mxu0 0.0
        %910 = vmatpush1.msra.mxu0 0.0
        %911 = vmatprep.subr.mxu0 0.0
        %912 = vmatpush1.msra.mxu0 0.0
        %913 = vmatprep.subr.mxu0 0.0
        %914 = vmatpush1.msra.mxu0 0.0
        %915 = vmatprep.subr.mxu0 0.0
        %916 = vmatpush1.msra.mxu0 0.0
        %917 = vmatprep.subr.mxu0 0.0
        %918 = vmatpush1.msra.mxu0 0.0
        %919 = vmatprep.subr.mxu0 0.0
        %920 = vmatpush1.msra.mxu0 0.0
        %921 = vmatprep.subr.mxu0 0.0
        %922 = vmatpush1.msra.mxu0 0.0
        %923 = vmatprep.subr.mxu0 0.0
        %924 = vmatpush1.msra.mxu0 0.0
        %925 = vmatprep.subr.mxu0 0.0
        %926 = vmatpush1.msra.mxu0 0.0
        %927 = vmatprep.subr.mxu0 0.0
        %928 = vmatpush1.msra.mxu0 0.0
        %929 = vmatprep.subr.mxu0 0.0
        %930 = vmatpush1.msra.mxu0 0.0
        %931 = vmatprep.subr.mxu0 0.0
        %932 = vmatpush1.msra.mxu0 0.0
        %933 = vmatprep.subr.mxu0 0.0
        %934 = vmatpush1.msra.mxu0 0.0
        %935 = vmatprep.subr.mxu0 0.0
        %936 = vmatpush1.msra.mxu0 0.0
        %937 = vmatprep.subr.mxu0 0.0
        %938 = vmatpush1.msra.mxu0 0.0
        %939 = vmatprep.subr.mxu0 0.0
        %940 = vmatpush1.msra.mxu0 0.0
        %941 = vmatprep.subr.mxu0 0.0
        %942 = vmatpush1.msra.mxu0 0.0
        %943 = vmatprep.subr.mxu0 0.0
        %944 = vmatpush1.msra.mxu0 0.0
        %945 = vmatprep.subr.mxu0 0.0
        %946 = vmatpush1.msra.mxu0 0.0
        %947 = vmatprep.subr.mxu0 0.0
        %948 = vmatpush1.msra.mxu0 0.0
        %949 = vmatprep.subr.mxu0 0.0
        %950 = vmatpush1.msra.mxu0 0.0
        %951 = vmatprep.subr.mxu0 0.0
        %952 = vmatpush1.msra.mxu0 0.0
        %953 = vmatprep.subr.mxu0 0.0
        %954 = vmatpush1.msra.mxu0 0.0
        %955 = vmatprep.subr.mxu0 0.0
        %956 = vmatpush1.msra.mxu0 0.0
        %957 = vmatprep.subr.mxu0 0.0
        %958 = vmatpush1.msra.mxu0 0.0
        %959 = vmatprep.subr.mxu0 0.0
        %960 = vmatpush1.msra.mxu0 0.0
        %961 = vmatprep.subr.mxu0 0.0
        %962 = vmatpush1.msra.mxu0 0.0
        %963 = vmatprep.subr.mxu0 0.0
        %964 = vmatpush1.msra.mxu0 0.0
        %965 = vmatprep.subr.mxu0 0.0
        %966 = vmatpush1.msra.mxu0 0.0
        %967 = vmatprep.subr.mxu0 0.0
        %968 = vmatpush1.msra.mxu0 0.0
        %969 = vmatprep.subr.mxu0 0.0
        %970 = vmatpush1.msra.mxu0 0.0
        %971 = vmatprep.mubr.f32.mxu0 0.0
        %972 = vmatmul.mubr.f32.gmra.mrb[0].mxu0 %v905
        %v973 = vpop.f32.mrb[0].mxu0
        %v974 = vadd.f32 0.0, %v973
        %v975 = vpop.f32.mrb[0].mxu0
        %976 = vdwg.mxu0
        %v977 = vxor.u32 %v974, 2147483648
        %v978 = vmul.f32 %v977, 1.442695
        %v979 = vpow.pop %v978
        %v980 = vadd.f32 %v979, 1.0
        %v981 = vrcp.pop %v980
        %v982 = vmul.f32 1.0, %v981
        %v985 = vunpack.c.l.s4 1966171168
        %v986 = vunpack.c.0.s8 %v985
        %v987 = vlaneseq
        %v988 = vshrl.u32 %v987, 7
        %v989 = vsub.s32 %v986, %v988
        %v990 = vrot.slane %v982, %v989
        %v991 = vcombine.high %v990, %v990
        %v993 = vunpack.c.l.s4 1966171168
        %v994 = vunpack.c.0.s8 %v993
        %v995 = vlaneseq
        %v996 = vshrl.u32 %v995, 7
        %v997 = vsub.s32 %v994, %v996
        %v998 = vrot.slane %v990, %v997
        %v1000 = vunpack.c.l.s4 1966171168
        %v1001 = vunpack.c.0.s8 %v1000
        %v1002 = vlaneseq
        %v1003 = vshrl.u32 %v1002, 7
        %v1004 = vsub.s32 %v1001, %v1003
        %v1005 = vrot.slane %v991, %v1004
        %v1006 = vcombine.high %v998, %v998
        %v1007 = vcombine.high %v1005, %v1005
        %v1008 = vlaneseq
        %v1009 = vshrl.u32 %v1008, 7
        %v1010 = vsub.s32 0, %v1009
        %v1011 = vrot.slane %v998, %v1010
        %v1012 = vlaneseq
        %v1013 = vshrl.u32 %v1012, 7
        %v1014 = vsub.s32 0, %v1013
        %v1015 = vrot.slane %v1005, %v1014
        %v1016 = vlaneseq
        %v1017 = vshrl.u32 %v1016, 7
        %v1018 = vsub.s32 0, %v1017
        %v1019 = vrot.slane %v1006, %v1018
        %v1020 = vlaneseq
        %v1021 = vshrl.u32 %v1020, 7
        %v1022 = vsub.s32 0, %v1021
        %v1023 = vrot.slane %v1007, %v1022
        %1024 = vset.pattern.permute.xlu0 0
        %1025 = vperm.xlu0 %1024, %v1011
        %v1026 = vpop.permute.xlu0 %1025
        %1028 = vset.pattern.permute.xlu0 0
        %1029 = vperm.xlu0 %1028, %v1015
        %v1030 = vpop.permute.xlu0 %1029
        %1032 = vset.pattern.permute.xlu0 0
        %1033 = vperm.xlu0 %1032, %v1019
        %v1034 = vpop.permute.xlu0 %1033
        %1036 = vset.pattern.permute.xlu0 0
        %1037 = vperm.xlu0 %1036, %v1023
        %v1038 = vpop.permute.xlu0 %1037
        %v1040 = vmul.f32 %v1026, %v894
        %v1041 = vmul.f32 %v1030, %v895
        %v1042 = vmul.f32 %v1034, %v896
        %v1043 = vmul.f32 %v1038, %v897
        %vm1044 = vcmask 588800
        %v1045 = vsel %vm1044, %v1040, 0.0
        %v1046 = vsel %vm1044, %v1041, 0.0
        %v1047 = vadd.f32 %v1045, %v1046
        %v1048 = vsel %vm1044, %v1042, 0.0
        %v1049 = vadd.f32 %v1047, %v1048
        %v1050 = vsel %vm1044, %v1043, 0.0
        %v1051 = vadd.f32 %v1049, %v1050
        %v1052 = vld [vmem:[#allocation2] sm:$0xff]
        %v1053 = vld [vmem:[#allocation2 + $0x8] sm:$0xff]
        %v1054 = vld [vmem:[#allocation2 + $0x20] sm:$0xff]
        %v1055 = vld [vmem:[#allocation2 + $0x28] sm:$0xff]
        %v1056 = vld [vmem:[#allocation2 + $0x40] sm:$0xff]
        %v1057 = vld [vmem:[#allocation2 + $0x48] sm:$0xff]
        %v1058 = vld [vmem:[#allocation2 + $0x60] sm:$0xff]
        %v1059 = vld [vmem:[#allocation2 + $0x68] sm:$0xff]
        %v1060 = vld [vmem:[#allocation2 + $0x80] sm:$0xff]
        %v1061 = vld [vmem:[#allocation2 + $0x88] sm:$0xff]
        %v1062 = vld [vmem:[#allocation2 + $0xa0] sm:$0xff]
        %v1063 = vld [vmem:[#allocation2 + $0xa8] sm:$0xff]
        %v1064 = vld [vmem:[#allocation2 + $0xc0] sm:$0xff]
        %v1065 = vld [vmem:[#allocation2 + $0xc8] sm:$0xff]
        %v1066 = vld [vmem:[#allocation2 + $0xe0] sm:$0xff]
        %v1067 = vld [vmem:[#allocation2 + $0xe8] sm:$0xff]
        %v1068 = vld [vmem:[#allocation2 + $0x100] sm:$0xff]
        %v1069 = vld [vmem:[#allocation2 + $0x108] sm:$0xff]
        %v1070 = vld [vmem:[%s6] sm:$0xff]
        %1072 = vset.pattern.permute.xlu0 0
        %1073 = vperm.xlu0 %1072, %v1070
        %v1074 = vpop.permute.xlu0 %1073
        %v1077 = vsel %vm1044, %v1051, 0
        %1079 = vmatprep.subr.mxu0 %v1053
        %1080 = vmatpush1.msra.mxu0 %v1052
        %1081 = vmatprep.subr.mxu0 %v1055
        %1082 = vmatpush1.msra.mxu0 %v1054
        %1083 = vmatprep.subr.mxu0 %v1057
        %1084 = vmatpush1.msra.mxu0 %v1056
        %1085 = vmatprep.subr.mxu0 %v1059
        %1086 = vmatpush1.msra.mxu0 %v1058
        %1087 = vmatprep.subr.mxu0 %v1061
        %1088 = vmatpush1.msra.mxu0 %v1060
        %1089 = vmatprep.subr.mxu0 %v1063
        %1090 = vmatpush1.msra.mxu0 %v1062
        %1091 = vmatprep.subr.mxu0 %v1065
        %1092 = vmatpush1.msra.mxu0 %v1064
        %1093 = vmatprep.subr.mxu0 %v1067
        %1094 = vmatpush1.msra.mxu0 %v1066
        %1095 = vmatprep.subr.mxu0 %v1069
        %1096 = vmatpush1.msra.mxu0 %v1068
        %1097 = vmatprep.subr.mxu0 0.0
        %1098 = vmatpush1.msra.mxu0 0.0
        %1099 = vmatprep.subr.mxu0 0.0
        %1100 = vmatpush1.msra.mxu0 0.0
        %1101 = vmatprep.subr.mxu0 0.0
        %1102 = vmatpush1.msra.mxu0 0.0
        %1103 = vmatprep.subr.mxu0 0.0
        %1104 = vmatpush1.msra.mxu0 0.0
        %1105 = vmatprep.subr.mxu0 0.0
        %1106 = vmatpush1.msra.mxu0 0.0
        %1107 = vmatprep.subr.mxu0 0.0
        %1108 = vmatpush1.msra.mxu0 0.0
        %1109 = vmatprep.subr.mxu0 0.0
        %1110 = vmatpush1.msra.mxu0 0.0
        %1111 = vmatprep.subr.mxu0 0.0
        %1112 = vmatpush1.msra.mxu0 0.0
        %1113 = vmatprep.subr.mxu0 0.0
        %1114 = vmatpush1.msra.mxu0 0.0
        %1115 = vmatprep.subr.mxu0 0.0
        %1116 = vmatpush1.msra.mxu0 0.0
        %1117 = vmatprep.subr.mxu0 0.0
        %1118 = vmatpush1.msra.mxu0 0.0
        %1119 = vmatprep.subr.mxu0 0.0
        %1120 = vmatpush1.msra.mxu0 0.0
        %1121 = vmatprep.subr.mxu0 0.0
        %1122 = vmatpush1.msra.mxu0 0.0
        %1123 = vmatprep.subr.mxu0 0.0
        %1124 = vmatpush1.msra.mxu0 0.0
        %1125 = vmatprep.subr.mxu0 0.0
        %1126 = vmatpush1.msra.mxu0 0.0
        %1127 = vmatprep.subr.mxu0 0.0
        %1128 = vmatpush1.msra.mxu0 0.0
        %1129 = vmatprep.subr.mxu0 0.0
        %1130 = vmatpush1.msra.mxu0 0.0
        %1131 = vmatprep.subr.mxu0 0.0
        %1132 = vmatpush1.msra.mxu0 0.0
        %1133 = vmatprep.subr.mxu0 0.0
        %1134 = vmatpush1.msra.mxu0 0.0
        %1135 = vmatprep.subr.mxu0 0.0
        %1136 = vmatpush1.msra.mxu0 0.0
        %1137 = vmatprep.subr.mxu0 0.0
        %1138 = vmatpush1.msra.mxu0 0.0
        %1139 = vmatprep.subr.mxu0 0.0
        %1140 = vmatpush1.msra.mxu0 0.0
        %1141 = vmatprep.subr.mxu0 0.0
        %1142 = vmatpush1.msra.mxu0 0.0
        %1143 = vmatprep.mubr.f32.mxu0 0.0
        %1144 = vmatmul.mubr.f32.gmra.mrb[0].mxu0 %v1077
        %v1145 = vpop.f32.mrb[0].mxu0
        %v1146 = vadd.f32 %v1074, %v1145
        %v1147 = vpop.f32.mrb[0].mxu0
        %v1148 = vadd.f32 %v1074, %v1147
        %1149 = vdwg.mxu0
        %v1150 = vmax.f32 %v1146, 0.0
        %v1151 = vmax.f32 %v1148, 0.0
        %1152 = vst [vmem:[#allocation3] sm:$0xff] %v1150
        %1153 = vst [vmem:[#allocation3 + $0x8] sm:$0xff] %v1151
        %v1154 = vadd.f32 %v526, %v527
        %1155 = vadd.xlane.f32.xlu0 %v1154
        %v1156 = vpop.xlane.xlu0 %1155
        %v1157 = vmul.f32 %v1156, %v901
        %1158 = vmatprep.subr.mxu0 0.0
        %1159 = vmatpush1.msra.mxu0 %v1157
        %1160 = vmatprep.subr.mxu0 0.0
        %1161 = vmatpush1.msra.mxu0 0.0
        %1162 = vmatprep.subr.mxu0 0.0
        %1163 = vmatpush1.msra.mxu0 0.0
        %1164 = vmatprep.subr.mxu0 0.0
        %1165 = vmatpush1.msra.mxu0 0.0
        %1166 = vmatprep.subr.mxu0 0.0
        %1167 = vmatpush1.msra.mxu0 0.0
        %1168 = vmatprep.subr.mxu0 0.0
        %1169 = vmatpush1.msra.mxu0 0.0
        %1170 = vmatprep.subr.mxu0 0.0
        %1171 = vmatpush1.msra.mxu0 0.0
        %1172 = vmatprep.subr.mxu0 0.0
        %1173 = vmatpush1.msra.mxu0 0.0
        %1174 = vmatprep.subr.mxu0 0.0
        %1175 = vmatpush1.msra.mxu0 0.0
        %1176 = vmatprep.subr.mxu0 0.0
        %1177 = vmatpush1.msra.mxu0 0.0
        %1178 = vmatprep.subr.mxu0 0.0
        %1179 = vmatpush1.msra.mxu0 0.0
        %1180 = vmatprep.subr.mxu0 0.0
        %1181 = vmatpush1.msra.mxu0 0.0
        %1182 = vmatprep.subr.mxu0 0.0
        %1183 = vmatpush1.msra.mxu0 0.0
        %1184 = vmatprep.subr.mxu0 0.0
        %1185 = vmatpush1.msra.mxu0 0.0
        %1186 = vmatprep.subr.mxu0 0.0
        %1187 = vmatpush1.msra.mxu0 0.0
        %1188 = vmatprep.subr.mxu0 0.0
        %1189 = vmatpush1.msra.mxu0 0.0
        %1190 = vmatprep.subr.mxu0 0.0
        %1191 = vmatpush1.msra.mxu0 0.0
        %1192 = vmatprep.subr.mxu0 0.0
        %1193 = vmatpush1.msra.mxu0 0.0
        %1194 = vmatprep.subr.mxu0 0.0
        %1195 = vmatpush1.msra.mxu0 0.0
        %1196 = vmatprep.subr.mxu0 0.0
        %1197 = vmatpush1.msra.mxu0 0.0
        %1198 = vmatprep.subr.mxu0 0.0
        %1199 = vmatpush1.msra.mxu0 0.0
        %1200 = vmatprep.subr.mxu0 0.0
        %1201 = vmatpush1.msra.mxu0 0.0
        %1202 = vmatprep.subr.mxu0 0.0
        %1203 = vmatpush1.msra.mxu0 0.0
        %1204 = vmatprep.subr.mxu0 0.0
        %1205 = vmatpush1.msra.mxu0 0.0
        %1206 = vmatprep.subr.mxu0 0.0
        %1207 = vmatpush1.msra.mxu0 0.0
        %1208 = vmatprep.subr.mxu0 0.0
        %1209 = vmatpush1.msra.mxu0 0.0
        %1210 = vmatprep.subr.mxu0 0.0
        %1211 = vmatpush1.msra.mxu0 0.0
        %1212 = vmatprep.subr.mxu0 0.0
        %1213 = vmatpush1.msra.mxu0 0.0
        %1214 = vmatprep.subr.mxu0 0.0
        %1215 = vmatpush1.msra.mxu0 0.0
        %1216 = vmatprep.subr.mxu0 0.0
        %1217 = vmatpush1.msra.mxu0 0.0
        %1218 = vmatprep.subr.mxu0 0.0
        %1219 = vmatpush1.msra.mxu0 0.0
        %1220 = vmatprep.subr.mxu0 0.0
        %1221 = vmatpush1.msra.mxu0 0.0
        %1222 = vmatprep.mubr.f32.mxu0 0.0
        %1223 = vmatmul.mubr.f32.gmra.mrb[0].mxu0 %v905
        %v1224 = vpop.f32.mrb[0].mxu0
        %v1225 = vadd.f32 0.0, %v1224
        %v1226 = vpop.f32.mrb[0].mxu0
        %1227 = vdwg.mxu0
        %v1228 = vxor.u32 %v1225, 2147483648
        %v1229 = vmul.f32 %v1228, 1.442695
        %v1230 = vpow.pop %v1229
        %v1231 = vadd.f32 %v1230, 1.0
        %v1232 = vrcp.pop %v1231
        %v1233 = vmul.f32 1.0, %v1232
        %v1236 = vunpack.c.l.s4 1966171168
        %v1237 = vunpack.c.0.s8 %v1236
        %v1238 = vlaneseq
        %v1239 = vshrl.u32 %v1238, 7
        %v1240 = vsub.s32 %v1237, %v1239
        %v1241 = vrot.slane %v1233, %v1240
        %v1242 = vcombine.high %v1241, %v1241
        %v1244 = vunpack.c.l.s4 1966171168
        %v1245 = vunpack.c.0.s8 %v1244
        %v1246 = vlaneseq
        %v1247 = vshrl.u32 %v1246, 7
        %v1248 = vsub.s32 %v1245, %v1247
        %v1249 = vrot.slane %v1241, %v1248
        %v1251 = vunpack.c.l.s4 1966171168
        %v1252 = vunpack.c.0.s8 %v1251
        %v1253 = vlaneseq
        %v1254 = vshrl.u32 %v1253, 7
        %v1255 = vsub.s32 %v1252, %v1254
        %v1256 = vrot.slane %v1242, %v1255
        %v1257 = vcombine.high %v1249, %v1249
        %v1258 = vcombine.high %v1256, %v1256
        %v1259 = vlaneseq
        %v1260 = vshrl.u32 %v1259, 7
        %v1261 = vsub.s32 0, %v1260
        %v1262 = vrot.slane %v1249, %v1261
        %v1263 = vlaneseq
        %v1264 = vshrl.u32 %v1263, 7
        %v1265 = vsub.s32 0, %v1264
        %v1266 = vrot.slane %v1256, %v1265
        %v1267 = vlaneseq
        %v1268 = vshrl.u32 %v1267, 7
        %v1269 = vsub.s32 0, %v1268
        %v1270 = vrot.slane %v1257, %v1269
        %v1271 = vlaneseq
        %v1272 = vshrl.u32 %v1271, 7
        %v1273 = vsub.s32 0, %v1272
        %v1274 = vrot.slane %v1258, %v1273
        %1275 = vset.pattern.permute.xlu0 0
        %1276 = vperm.xlu0 %1275, %v1262
        %v1277 = vpop.permute.xlu0 %1276
        %1279 = vset.pattern.permute.xlu0 0
        %1280 = vperm.xlu0 %1279, %v1266
        %v1281 = vpop.permute.xlu0 %1280
        %1283 = vset.pattern.permute.xlu0 0
        %1284 = vperm.xlu0 %1283, %v1270
        %v1285 = vpop.permute.xlu0 %1284
        %1287 = vset.pattern.permute.xlu0 0
        %1288 = vperm.xlu0 %1287, %v1274
        %v1289 = vpop.permute.xlu0 %1288
        %v1291 = vmul.f32 %v1277, %v894
        %v1292 = vmul.f32 %v1281, %v895
        %v1293 = vmul.f32 %v1285, %v896
        %v1294 = vmul.f32 %v1289, %v897
        %v1295 = vsel %vm1044, %v1291, 0.0
        %v1296 = vsel %vm1044, %v1292, 0.0
        %v1297 = vadd.f32 %v1295, %v1296
        %v1298 = vsel %vm1044, %v1293, 0.0
        %v1299 = vadd.f32 %v1297, %v1298
        %v1300 = vsel %vm1044, %v1294, 0.0
        %v1301 = vadd.f32 %v1299, %v1300
        %v1302 = vld [vmem:[#allocation2 + $0x10] sm:$0xff]
        %v1303 = vld [vmem:[#allocation2 + $0x18] sm:$0xff]
        %v1304 = vld [vmem:[#allocation2 + $0x30] sm:$0xff]
        %v1305 = vld [vmem:[#allocation2 + $0x38] sm:$0xff]
        %v1306 = vld [vmem:[#allocation2 + $0x50] sm:$0xff]
        %v1307 = vld [vmem:[#allocation2 + $0x58] sm:$0xff]
        %v1308 = vld [vmem:[#allocation2 + $0x70] sm:$0xff]
        %v1309 = vld [vmem:[#allocation2 + $0x78] sm:$0xff]
        %v1310 = vld [vmem:[#allocation2 + $0x90] sm:$0xff]
        %v1311 = vld [vmem:[#allocation2 + $0x98] sm:$0xff]
        %v1312 = vld [vmem:[#allocation2 + $0xb0] sm:$0xff]
        %v1313 = vld [vmem:[#allocation2 + $0xb8] sm:$0xff]
        %v1314 = vld [vmem:[#allocation2 + $0xd0] sm:$0xff]
        %v1315 = vld [vmem:[#allocation2 + $0xd8] sm:$0xff]
        %v1316 = vld [vmem:[#allocation2 + $0xf0] sm:$0xff]
        %v1317 = vld [vmem:[#allocation2 + $0xf8] sm:$0xff]
        %v1318 = vld [vmem:[#allocation2 + $0x110] sm:$0xff]
        %v1319 = vld [vmem:[#allocation2 + $0x118] sm:$0xff]
        %v1320 = vld [vmem:[%s6] sm:$0xff]
        %1322 = vset.pattern.permute.xlu0 0
        %1323 = vperm.xlu0 %1322, %v1320
        %v1324 = vpop.permute.xlu0 %1323
        %v1327 = vsel %vm1044, %v1301, 0
        %1329 = vmatprep.subr.mxu0 %v1303
        %1330 = vmatpush1.msra.mxu0 %v1302
        %1331 = vmatprep.subr.mxu0 %v1305
        %1332 = vmatpush1.msra.mxu0 %v1304
        %1333 = vmatprep.subr.mxu0 %v1307
        %1334 = vmatpush1.msra.mxu0 %v1306
        %1335 = vmatprep.subr.mxu0 %v1309
        %1336 = vmatpush1.msra.mxu0 %v1308
        %1337 = vmatprep.subr.mxu0 %v1311
        %1338 = vmatpush1.msra.mxu0 %v1310
        %1339 = vmatprep.subr.mxu0 %v1313
        %1340 = vmatpush1.msra.mxu0 %v1312
        %1341 = vmatprep.subr.mxu0 %v1315
        %1342 = vmatpush1.msra.mxu0 %v1314
        %1343 = vmatprep.subr.mxu0 %v1317
        %1344 = vmatpush1.msra.mxu0 %v1316
        %1345 = vmatprep.subr.mxu0 %v1319
        %1346 = vmatpush1.msra.mxu0 %v1318
        %1347 = vmatprep.subr.mxu0 0.0
        %1348 = vmatpush1.msra.mxu0 0.0
        %1349 = vmatprep.subr.mxu0 0.0
        %1350 = vmatpush1.msra.mxu0 0.0
        %1351 = vmatprep.subr.mxu0 0.0
        %1352 = vmatpush1.msra.mxu0 0.0
        %1353 = vmatprep.subr.mxu0 0.0
        %1354 = vmatpush1.msra.mxu0 0.0
        %1355 = vmatprep.subr.mxu0 0.0
        %1356 = vmatpush1.msra.mxu0 0.0
        %1357 = vmatprep.subr.mxu0 0.0
        %1358 = vmatpush1.msra.mxu0 0.0
        %1359 = vmatprep.subr.mxu0 0.0
        %1360 = vmatpush1.msra.mxu0 0.0
        %1361 = vmatprep.subr.mxu0 0.0
        %1362 = vmatpush1.msra.mxu0 0.0
        %1363 = vmatprep.subr.mxu0 0.0
        %1364 = vmatpush1.msra.mxu0 0.0
        %1365 = vmatprep.subr.mxu0 0.0
        %1366 = vmatpush1.msra.mxu0 0.0
        %1367 = vmatprep.subr.mxu0 0.0
        %1368 = vmatpush1.msra.mxu0 0.0
        %1369 = vmatprep.subr.mxu0 0.0
        %1370 = vmatpush1.msra.mxu0 0.0
        %1371 = vmatprep.subr.mxu0 0.0
        %1372 = vmatpush1.msra.mxu0 0.0
        %1373 = vmatprep.subr.mxu0 0.0
        %1374 = vmatpush1.msra.mxu0 0.0
        %1375 = vmatprep.subr.mxu0 0.0
        %1376 = vmatpush1.msra.mxu0 0.0
        %1377 = vmatprep.subr.mxu0 0.0
        %1378 = vmatpush1.msra.mxu0 0.0
        %1379 = vmatprep.subr.mxu0 0.0
        %1380 = vmatpush1.msra.mxu0 0.0
        %1381 = vmatprep.subr.mxu0 0.0
        %1382 = vmatpush1.msra.mxu0 0.0
        %1383 = vmatprep.subr.mxu0 0.0
        %1384 = vmatpush1.msra.mxu0 0.0
        %1385 = vmatprep.subr.mxu0 0.0
        %1386 = vmatpush1.msra.mxu0 0.0
        %1387 = vmatprep.subr.mxu0 0.0
        %1388 = vmatpush1.msra.mxu0 0.0
        %1389 = vmatprep.subr.mxu0 0.0
        %1390 = vmatpush1.msra.mxu0 0.0
        %1391 = vmatprep.subr.mxu0 0.0
        %1392 = vmatpush1.msra.mxu0 0.0
        %1393 = vmatprep.mubr.f32.mxu0 0.0
        %1394 = vmatmul.mubr.f32.gmra.mrb[0].mxu0 %v1327
        %v1395 = vpop.f32.mrb[0].mxu0
        %v1396 = vadd.f32 %v1324, %v1395
        %v1397 = vpop.f32.mrb[0].mxu0
        %v1398 = vadd.f32 %v1324, %v1397
        %1399 = vdwg.mxu0
        %v1400 = vmax.f32 %v1396, 0.0
        %v1401 = vmax.f32 %v1398, 0.0
        %1402 = vst [vmem:[#allocation3 + $0x10] sm:$0xff] %v1400
        %1403 = vst [vmem:[#allocation3 + $0x18] sm:$0xff] %v1401
        %v1404 = vld [vmem:[%s7] sm:$0xff]
        %v1405 = vld [vmem:[%s7 + $0x8] sm:$0xff]
        %v1406 = vld [vmem:[%s7 + $0x10] sm:$0xff]
        %v1407 = vld [vmem:[%s7 + $0x18] sm:$0xff]
        %v1408 = vld [vmem:[#allocation3] sm:$0xff]
        %v1409 = vld [vmem:[#allocation3 + $0x8] sm:$0xff]
        %v1410 = vld [vmem:[#allocation3 + $0x10] sm:$0xff]
        %v1411 = vld [vmem:[#allocation3 + $0x18] sm:$0xff]
        %v1412 = vld [vmem:[#allocation3 + $0x20] sm:$0xff]
        %v1413 = vld [vmem:[#allocation3 + $0x28] sm:$0xff]
        %v1414 = vld [vmem:[#allocation3 + $0x30] sm:$0xff]
        %v1415 = vld [vmem:[#allocation3 + $0x38] sm:$0xff]
        %v1416 = vld [vmem:[#allocation3 + $0x40] sm:$0xff]
        %v1417 = vld [vmem:[#allocation3 + $0x48] sm:$0xff]
        %v1418 = vld [vmem:[#allocation3 + $0x50] sm:$0xff]
        %v1419 = vld [vmem:[#allocation3 + $0x58] sm:$0xff]
        %v1420 = vld [vmem:[%s8] sm:$0xff]
        %v1421 = vld [vmem:[%s8 + $0x8] sm:$0xff]
        %v1422 = vld [vmem:[%s8 + $0x10] sm:$0xff]
        %v1423 = vld [vmem:[%s8 + $0x18] sm:$0xff]
        %1425 = vset.pattern.permute.xlu0 0
        %1426 = vperm.xlu0 %1425, %v1420
        %v1427 = vpop.permute.xlu0 %1426
        %1430 = vset.pattern.permute.xlu0 0
        %1431 = vperm.xlu0 %1430, %v1421
        %v1432 = vpop.permute.xlu0 %1431
        %1435 = vset.pattern.permute.xlu0 0
        %1436 = vperm.xlu0 %1435, %v1422
        %v1437 = vpop.permute.xlu0 %1436
        %1440 = vset.pattern.permute.xlu0 0
        %1441 = vperm.xlu0 %1440, %v1423
        %v1442 = vpop.permute.xlu0 %1441
        %vm1444 = vcmask 195584
        %v1446 = vsel %vm1444, %v1404, 0
        %v1449 = vsel %vm1444, %v1405, 0
        %v1452 = vsel %vm1444, %v1406, 0
        %v1455 = vsel %vm1444, %v1407, 0
        %1457 = vmatprep.subr.mxu0 %v1409
        %1458 = vmatpush1.msra.mxu0 %v1408
        %1459 = vmatprep.subr.mxu0 %v1413
        %1460 = vmatpush1.msra.mxu0 %v1412
        %1461 = vmatprep.subr.mxu0 %v1417
        %1462 = vmatpush1.msra.mxu0 %v1416
        %1463 = vmatprep.subr.mxu0 0.0
        %1464 = vmatpush1.msra.mxu0 0.0
        %1465 = vmatprep.subr.mxu0 0.0
        %1466 = vmatpush1.msra.mxu0 0.0
        %1467 = vmatprep.subr.mxu0 0.0
        %1468 = vmatpush1.msra.mxu0 0.0
        %1469 = vmatprep.subr.mxu0 0.0
        %1470 = vmatpush1.msra.mxu0 0.0
        %1471 = vmatprep.subr.mxu0 0.0
        %1472 = vmatpush1.msra.mxu0 0.0
        %1473 = vmatprep.subr.mxu0 0.0
        %1474 = vmatpush1.msra.mxu0 0.0
        %1475 = vmatprep.subr.mxu0 0.0
        %1476 = vmatpush1.msra.mxu0 0.0
        %1477 = vmatprep.subr.mxu0 0.0
        %1478 = vmatpush1.msra.mxu0 0.0
        %1479 = vmatprep.subr.mxu0 0.0
        %1480 = vmatpush1.msra.mxu0 0.0
        %1481 = vmatprep.subr.mxu0 0.0
        %1482 = vmatpush1.msra.mxu0 0.0
        %1483 = vmatprep.subr.mxu0 0.0
        %1484 = vmatpush1.msra.mxu0 0.0
        %1485 = vmatprep.subr.mxu0 0.0
        %1486 = vmatpush1.msra.mxu0 0.0
        %1487 = vmatprep.subr.mxu0 0.0
        %1488 = vmatpush1.msra.mxu0 0.0
        %1489 = vmatprep.subr.mxu0 0.0
        %1490 = vmatpush1.msra.mxu0 0.0
        %1491 = vmatprep.subr.mxu0 0.0
        %1492 = vmatpush1.msra.mxu0 0.0
        %1493 = vmatprep.subr.mxu0 0.0
        %1494 = vmatpush1.msra.mxu0 0.0
        %1495 = vmatprep.subr.mxu0 0.0
        %1496 = vmatpush1.msra.mxu0 0.0
        %1497 = vmatprep.subr.mxu0 0.0
        %1498 = vmatpush1.msra.mxu0 0.0
        %1499 = vmatprep.subr.mxu0 0.0
        %1500 = vmatpush1.msra.mxu0 0.0
        %1501 = vmatprep.subr.mxu0 0.0
        %1502 = vmatpush1.msra.mxu0 0.0
        %1503 = vmatprep.subr.mxu0 0.0
        %1504 = vmatpush1.msra.mxu0 0.0
        %1505 = vmatprep.subr.mxu0 0.0
        %1506 = vmatpush1.msra.mxu0 0.0
        %1507 = vmatprep.subr.mxu0 0.0
        %1508 = vmatpush1.msra.mxu0 0.0
        %1509 = vmatprep.subr.mxu0 0.0
        %1510 = vmatpush1.msra.mxu0 0.0
        %1511 = vmatprep.subr.mxu0 0.0
        %1512 = vmatpush1.msra.mxu0 0.0
        %1513 = vmatprep.subr.mxu0 0.0
        %1514 = vmatpush1.msra.mxu0 0.0
        %1515 = vmatprep.subr.mxu0 0.0
        %1516 = vmatpush1.msra.mxu0 0.0
        %1517 = vmatprep.subr.mxu0 0.0
        %1518 = vmatpush1.msra.mxu0 0.0
        %1519 = vmatprep.subr.mxu0 0.0
        %1520 = vmatpush1.msra.mxu0 0.0
        %1521 = vmatprep.mubr.f32.mxu0 0.0
        %1522 = vmatmul.mubr.f32.gmra.mrb[0].mxu0 %v1446
        %v1523 = vpop.f32.mrb[0].mxu0
        %v1524 = vadd.f32 %v1427, %v1523
        %v1525 = vpop.f32.mrb[0].mxu0
        %v1526 = vadd.f32 %v1427, %v1525
        %1527 = vmatprep.mubr.f32.mxu0 0.0
        %1528 = vmatmul.mubr.f32.gmra.mrb[0].mxu0 %v1449
        %v1529 = vpop.f32.mrb[0].mxu0
        %v1530 = vadd.f32 %v1432, %v1529
        %v1531 = vpop.f32.mrb[0].mxu0
        %v1532 = vadd.f32 %v1432, %v1531
        %1533 = vmatprep.mubr.f32.mxu0 0.0
        %1534 = vmatmul.mubr.f32.gmra.mrb[0].mxu0 %v1452
        %v1535 = vpop.f32.mrb[0].mxu0
        %v1536 = vadd.f32 %v1437, %v1535
        %v1537 = vpop.f32.mrb[0].mxu0
        %v1538 = vadd.f32 %v1437, %v1537
        %1539 = vmatprep.mubr.f32.mxu0 0.0
        %1540 = vmatmul.mubr.f32.gmra.mrb[0].mxu0 %v1455
        %v1541 = vpop.f32.mrb[0].mxu0
        %v1542 = vadd.f32 %v1442, %v1541
        %v1543 = vpop.f32.mrb[0].mxu0
        %v1544 = vadd.f32 %v1442, %v1543
        %1545 = vdwg.mxu0
        %1546 = vmatprep.subr.mxu0 %v1411
        %1547 = vmatpush1.msra.mxu0 %v1410
        %1548 = vmatprep.subr.mxu0 %v1415
        %1549 = vmatpush1.msra.mxu0 %v1414
        %1550 = vmatprep.subr.mxu0 %v1419
        %1551 = vmatpush1.msra.mxu0 %v1418
        %1552 = vmatprep.subr.mxu0 0.0
        %1553 = vmatpush1.msra.mxu0 0.0
        %1554 = vmatprep.subr.mxu0 0.0
        %1555 = vmatpush1.msra.mxu0 0.0
        %1556 = vmatprep.subr.mxu0 0.0
        %1557 = vmatpush1.msra.mxu0 0.0
        %1558 = vmatprep.subr.mxu0 0.0
        %1559 = vmatpush1.msra.mxu0 0.0
        %1560 = vmatprep.subr.mxu0 0.0
        %1561 = vmatpush1.msra.mxu0 0.0
        %1562 = vmatprep.subr.mxu0 0.0
        %1563 = vmatpush1.msra.mxu0 0.0
        %1564 = vmatprep.subr.mxu0 0.0
        %1565 = vmatpush1.msra.mxu0 0.0
        %1566 = vmatprep.subr.mxu0 0.0
        %1567 = vmatpush1.msra.mxu0 0.0
        %1568 = vmatprep.subr.mxu0 0.0
        %1569 = vmatpush1.msra.mxu0 0.0
        %1570 = vmatprep.subr.mxu0 0.0
        %1571 = vmatpush1.msra.mxu0 0.0
        %1572 = vmatprep.subr.mxu0 0.0
        %1573 = vmatpush1.msra.mxu0 0.0
        %1574 = vmatprep.subr.mxu0 0.0
        %1575 = vmatpush1.msra.mxu0 0.0
        %1576 = vmatprep.subr.mxu0 0.0
        %1577 = vmatpush1.msra.mxu0 0.0
        %1578 = vmatprep.subr.mxu0 0.0
        %1579 = vmatpush1.msra.mxu0 0.0
        %1580 = vmatprep.subr.mxu0 0.0
        %1581 = vmatpush1.msra.mxu0 0.0
        %1582 = vmatprep.subr.mxu0 0.0
        %1583 = vmatpush1.msra.mxu0 0.0
        %1584 = vmatprep.subr.mxu0 0.0
        %1585 = vmatpush1.msra.mxu0 0.0
        %1586 = vmatprep.subr.mxu0 0.0
        %1587 = vmatpush1.msra.mxu0 0.0
        %1588 = vmatprep.subr.mxu0 0.0
        %1589 = vmatpush1.msra.mxu0 0.0
        %1590 = vmatprep.subr.mxu0 0.0
        %1591 = vmatpush1.msra.mxu0 0.0
        %1592 = vmatprep.subr.mxu0 0.0
        %1593 = vmatpush1.msra.mxu0 0.0
        %1594 = vmatprep.subr.mxu0 0.0
        %1595 = vmatpush1.msra.mxu0 0.0
        %1596 = vmatprep.subr.mxu0 0.0
        %1597 = vmatpush1.msra.mxu0 0.0
        %1598 = vmatprep.subr.mxu0 0.0
        %1599 = vmatpush1.msra.mxu0 0.0
        %1600 = vmatprep.subr.mxu0 0.0
        %1601 = vmatpush1.msra.mxu0 0.0
        %1602 = vmatprep.subr.mxu0 0.0
        %1603 = vmatpush1.msra.mxu0 0.0
        %1604 = vmatprep.subr.mxu0 0.0
        %1605 = vmatpush1.msra.mxu0 0.0
        %1606 = vmatprep.subr.mxu0 0.0
        %1607 = vmatpush1.msra.mxu0 0.0
        %1608 = vmatprep.subr.mxu0 0.0
        %1609 = vmatpush1.msra.mxu0 0.0
        %1610 = vmatprep.mubr.f32.mxu0 0.0
        %1611 = vmatmul.mubr.f32.gmra.mrb[0].mxu0 %v1446
        %v1612 = vpop.f32.mrb[0].mxu0
        %v1613 = vadd.f32 %v1427, %v1612
        %v1614 = vpop.f32.mrb[0].mxu0
        %v1615 = vadd.f32 %v1427, %v1614
        %1616 = vmatprep.mubr.f32.mxu0 0.0
        %1617 = vmatmul.mubr.f32.gmra.mrb[0].mxu0 %v1449
        %v1618 = vpop.f32.mrb[0].mxu0
        %v1619 = vadd.f32 %v1432, %v1618
        %v1620 = vpop.f32.mrb[0].mxu0
        %v1621 = vadd.f32 %v1432, %v1620
        %1622 = vmatprep.mubr.f32.mxu0 0.0
        %1623 = vmatmul.mubr.f32.gmra.mrb[0].mxu0 %v1452
        %v1624 = vpop.f32.mrb[0].mxu0
        %v1625 = vadd.f32 %v1437, %v1624
        %v1626 = vpop.f32.mrb[0].mxu0
        %v1627 = vadd.f32 %v1437, %v1626
        %1628 = vmatprep.mubr.f32.mxu0 0.0
        %1629 = vmatmul.mubr.f32.gmra.mrb[0].mxu0 %v1455
        %v1630 = vpop.f32.mrb[0].mxu0
        %v1631 = vadd.f32 %v1442, %v1630
        %v1632 = vpop.f32.mrb[0].mxu0
        %v1633 = vadd.f32 %v1442, %v1632
        %1634 = vdwg.mxu0
        %v1635 = vmax.f32 %v1524, 0.0
        %v1636 = vmax.f32 %v1526, 0.0
        %v1637 = vmax.f32 %v1613, 0.0
        %v1638 = vmax.f32 %v1615, 0.0
        %v1639 = vmax.f32 %v1530, 0.0
        %v1640 = vmax.f32 %v1532, 0.0
        %v1641 = vmax.f32 %v1619, 0.0
        %v1642 = vmax.f32 %v1621, 0.0
        %v1643 = vmax.f32 %v1536, 0.0
        %v1644 = vmax.f32 %v1538, 0.0
        %v1645 = vmax.f32 %v1625, 0.0
        %v1646 = vmax.f32 %v1627, 0.0
        %v1647 = vmax.f32 %v1542, 0.0
        %v1648 = vmax.f32 %v1544, 0.0
        %v1649 = vmax.f32 %v1631, 0.0
        %v1650 = vmax.f32 %v1633, 0.0
        %1651 = vst [vmem:[%s360] sm:$0xff] %v1635
        %1652 = vst [vmem:[%s360 + $0x8] sm:$0xff] %v1636
        %1653 = vst [vmem:[%s360 + $0x10] sm:$0xff] %v1637
        %1654 = vst [vmem:[%s360 + $0x18] sm:$0xff] %v1638
        %1655 = vst [vmem:[%s360 + $0x20] sm:$0xff] %v1639
        %1656 = vst [vmem:[%s360 + $0x28] sm:$0xff] %v1640
        %1657 = vst [vmem:[%s360 + $0x30] sm:$0xff] %v1641
        %1658 = vst [vmem:[%s360 + $0x38] sm:$0xff] %v1642
        %1659 = vst [vmem:[%s360 + $0x40] sm:$0xff] %v1643
        %1660 = vst [vmem:[%s360 + $0x48] sm:$0xff] %v1644
        %1661 = vst [vmem:[%s360 + $0x50] sm:$0xff] %v1645
        %1662 = vst [vmem:[%s360 + $0x58] sm:$0xff] %v1646
        %1663 = vst [vmem:[%s360 + $0x60] sm:$0xff] %v1647
        %1664 = vst [vmem:[%s360 + $0x68] sm:$0xff] %v1648
        %1665 = vst [vmem:[%s360 + $0x70] sm:$0xff] %v1649
        %1666 = vst [vmem:[%s360 + $0x78] sm:$0xff] %v1650
        %s1667 = sand.u32 %s222, 1
        %s1668 = sand.u32 %s222, 1
        %s1669 = smul.addr %s1668, 128
        %s1670 = scalar_lea.vmem [#allocation5], %s1669
        // Predicated region
        $region80: #{decoder_forward_pallas.1} parent=74 // pred_check
          %p1671 = pneg %p232
        $region81: #{decoder_forward_pallas.1} parent=74 // pred_check_branch
          %1673 = sbr.rel (%p1671) target = $region83
        $region82: #{decoder_forward_pallas.1} parent=74 // pred_region
          %s1674 = smul.u32 4, %s20
          %s1675 = smul.addr %s1674, 8
          %s1676 = scalar_lea.vmem %s9, %s1675
          // Predicated region
          $region84: #{decoder_forward_pallas.1} parent=82 // pred_check
            _
          $region85: #{decoder_forward_pallas.1} parent=82 // pred_check_branch
            %1678 = sbr.rel (0) target = $region87
          $region86: #{decoder_forward_pallas.1} parent=82 // pred_region
            // Predicated region
            $region88: #{decoder_forward_pallas.1} parent=86 // pred_check
              _
            $region89: #{decoder_forward_pallas.1} parent=86 // pred_check_branch
              %1680 = sbr.rel (0) target = $region91
            $region90: #{decoder_forward_pallas.1} parent=86 // pred_region
              loop: start=0, step=1, limit=1
              $region92: #{decoder_forward_pallas.1} parent=90 // loop_pre_header
                _
              $region93: #{decoder_forward_pallas.1} parent=90 // loop_header
                %s1682 = sphi 0, %s1686
                %p1683 = scmp.ge.s32.totalorder %s1682, 1
                %s1687 = sphi %s1670, %s1670
                %s1688 = sphi %s1676, %s1676
              $region94: #{decoder_forward_pallas.1} parent=90 // loop_header_branch
                %1685 = sbr.rel (%p1683) target = $region98
              $region95: #{decoder_forward_pallas.1} parent=90 // loop_body
                %v1689 = vld [vmem:[%s1687] sm:$0xff]
                %1690 = vst [vmem:[%s1688] sm:$0xff] %v1689
                %v1691 = vld [vmem:[%s1687 + $0x8] sm:$0xff]
                %1692 = vst [vmem:[%s1688 + $0x8] sm:$0xff] %v1691
                %v1693 = vld [vmem:[%s1687 + $0x10] sm:$0xff]
                %1694 = vst [vmem:[%s1688 + $0x10] sm:$0xff] %v1693
                %v1695 = vld [vmem:[%s1687 + $0x18] sm:$0xff]
                %1696 = vst [vmem:[%s1688 + $0x18] sm:$0xff] %v1695
                %v1697 = vld [vmem:[%s1687 + $0x20] sm:$0xff]
                %1698 = vst [vmem:[%s1688 + $0x40] sm:$0xff] %v1697
                %v1699 = vld [vmem:[%s1687 + $0x28] sm:$0xff]
                %1700 = vst [vmem:[%s1688 + $0x48] sm:$0xff] %v1699
                %v1701 = vld [vmem:[%s1687 + $0x30] sm:$0xff]
                %1702 = vst [vmem:[%s1688 + $0x50] sm:$0xff] %v1701
                %v1703 = vld [vmem:[%s1687 + $0x38] sm:$0xff]
                %1704 = vst [vmem:[%s1688 + $0x58] sm:$0xff] %v1703
                %v1705 = vld [vmem:[%s1687 + $0x40] sm:$0xff]
                %1706 = vst [vmem:[%s1688 + $0x80] sm:$0xff] %v1705
                %v1707 = vld [vmem:[%s1687 + $0x48] sm:$0xff]
                %1708 = vst [vmem:[%s1688 + $0x88] sm:$0xff] %v1707
                %v1709 = vld [vmem:[%s1687 + $0x50] sm:$0xff]
                %1710 = vst [vmem:[%s1688 + $0x90] sm:$0xff] %v1709
                %v1711 = vld [vmem:[%s1687 + $0x58] sm:$0xff]
                %1712 = vst [vmem:[%s1688 + $0x98] sm:$0xff] %v1711
                %v1713 = vld [vmem:[%s1687 + $0x60] sm:$0xff]
                %1714 = vst [vmem:[%s1688 + $0xc0] sm:$0xff] %v1713
                %v1715 = vld [vmem:[%s1687 + $0x68] sm:$0xff]
                %1716 = vst [vmem:[%s1688 + $0xc8] sm:$0xff] %v1715
                %v1717 = vld [vmem:[%s1687 + $0x70] sm:$0xff]
                %1718 = vst [vmem:[%s1688 + $0xd0] sm:$0xff] %v1717
                %v1719 = vld [vmem:[%s1687 + $0x78] sm:$0xff]
                %1720 = vst [vmem:[%s1688 + $0xd8] sm:$0xff] %v1719
              $region96: #{decoder_forward_pallas.1} parent=90 // loop_footer
                %s1686 = sadd.s32 1, %s1682
              $region97: #{decoder_forward_pallas.1} parent=90 // loop_footer_branch
                %1681 = sbr.rel target = $region93
              $region98: #{decoder_forward_pallas.1} parent=90 // loop_exit
                _
            $region91: #{decoder_forward_pallas.1} parent=86 // pred_fallthru
              _
            // Predicated region
            $region99: #{decoder_forward_pallas.1} parent=86 // pred_check
              _
            $region100: #{decoder_forward_pallas.1} parent=86 // pred_check_branch
              %1722 = sbr.rel target = $region102
            $region101: #{decoder_forward_pallas.1} parent=86 // pred_region
              _
            $region102: #{decoder_forward_pallas.1} parent=86 // pred_fallthru
              _
          $region87: #{decoder_forward_pallas.1} parent=82 // pred_fallthru
            _
          %1723 = vnop
        $region83: #{decoder_forward_pallas.1} parent=74 // pred_fallthru
          _
      $region75: #{decoder_forward_pallas.1} parent=5 // pred_fallthru
        _
      %p1724 = scmp.le.s32.totalorder 2, %s15
      // Predicated region
      $region103: #{decoder_forward_pallas.1} parent=5 // pred_check
        %p1725 = pneg %p1724
      $region104: #{decoder_forward_pallas.1} parent=5 // pred_check_branch
        %1727 = sbr.rel (%p1725) target = $region106
      $region105: #{decoder_forward_pallas.1} parent=5 // pred_region
        %s1728 = ssub.s32 %s15, 2
        // Predicated region
        $region107: #{decoder_forward_pallas.1} parent=105 // pred_check
          %p1729 = pneg %p238
        $region108: #{decoder_forward_pallas.1} parent=105 // pred_check_branch
          %1731 = sbr.rel (%p1729) target = $region110
        $region109: #{decoder_forward_pallas.1} parent=105 // pred_region
          %s1732 = sand.u32 %s223, 1
          %s1733 = sand.u32 %s223, 1
          %s1734 = smul.addr %s1733, 128
          %s1735 = scalar_lea.vmem [#allocation5], %s1734
        $region110: #{decoder_forward_pallas.1} parent=105 // pred_fallthru
          _
      $region106: #{decoder_forward_pallas.1} parent=5 // pred_fallthru
        _
    $region6: #{decoder_forward_pallas.1} parent=1 // loop_footer
      %s19 = sadd.s32 1, %s15
    $region7: #{decoder_forward_pallas.1} parent=1 // loop_footer_branch
      %14 = sbr.rel target = $region3
    $region8: #{decoder_forward_pallas.1} parent=1 // loop_exit
      _

</llo_original>
